<compile_context>
chip_gen: v5e
topology: v5e:2x2
jax: 0.10.0
libtpu: 0.0.40
codegen_flags: <defaults>
</compile_context>

<pallas_src>
import functools

import jax
import jax.numpy as jnp
from jax import lax
from jax.experimental import pallas as pl
from jax.experimental.pallas import tpu as pltpu


def _round_up(x, m):
    return ((x + m - 1) // m) * m


def _basic_block_kernel(x_ref, w1_ref, s1_ref, b1_ref, w2_ref, s2_ref, b2_ref,
                        out_ref, hs_ref, *, H, W, PADLEN, TL):
    """BasicBlock forward for one grid step (bN images folded onto lanes).

    Layout: channels on sublanes; each image's zero-padded (H+2)x(W+2) grid is
    flattened onto PADLEN lanes; the step's bN images are consecutive PADLEN
    segments.  Every 3x3 tap is then a contiguous lane window at a static offset.

    x_ref  : (CP, TL+EXTRA)   bf16  zero-padded inputs of this step (+ slack lanes)
    w1_ref : (3, CP, 3*CP)    bf16  conv1, kh-major, kw taps stacked on the K axis
    s1/b1  : (CP, 1)          f32   folded BN1 scale / bias
    w2_ref : (3, CP, 3*CP)    bf16  conv2
    s2/b2  : (CP, 1)          f32   folded BN2 scale / bias
    out_ref: (CP, TL)         bf16  output in the padded lane layout
    hs_ref : (CP, TL+EXTRA)   bf16  VMEM slab: conv2's zero-padded input
    """
    CP = hs_ref.shape[0]
    BLK = hs_ref.shape[1]
    W2 = W + 2
    L = H * W2
    lead = W2 + 1

    # Hoisted once per step: folded BN params and the interior-lane mask.
    s1 = s1_ref[...]
    b1 = b1_ref[...]
    s2 = s2_ref[...]
    b2 = b2_ref[...]
    lane = lax.broadcasted_iota(jnp.int32, (1, TL), 1)
    local = lane % PADLEN
    valid = (local < L) & ((local % W2) < W)   # true only on real output pixels

    def conv3x3(src_ref, w_ref):
        # Per kh: stack the 3 kw-shifted windows on the contraction (sublane) axis
        # -> one MXU matmul with K = 3*CP; accumulate the 3 kh partials (2 adds).
        acc = None
        for kh in range(3):
            rhs = jnp.concatenate(
                [src_ref[:, pl.ds(kh * W2 + kw, TL)] for kw in range(3)], axis=0)
            part = jnp.dot(w_ref[kh], rhs, preferred_element_type=jnp.float32)
            acc = part if acc is None else acc + part
        return acc

    # ---- conv1 -> bn1 -> relu (f32 epilogue on the VPU) ---------------------------
    h1 = jnp.maximum(conv3x3(x_ref, w1_ref) * s1 + b1, 0.0)
    # Zero every non-interior lane so the single wide store below also writes the
    # per-image top/bottom/side zero padding of conv2's input slab.
    h1 = jnp.where(valid, h1, 0.0)

    # ---- conv2's zero-padded input slab -------------------------------------------
    # Only the global leading / trailing slab borders need explicit zeroing
    # (2 tiny stores per step); everything else comes from the masked h1 store.
    hs_ref[:, pl.ds(0, lead)] = jnp.zeros((CP, lead), hs_ref.dtype)
    tail = BLK - (lead + TL)
    hs_ref[:, pl.ds(lead + TL, tail)] = jnp.zeros((CP, tail), hs_ref.dtype)
    hs_ref[:, pl.ds(lead, TL)] = h1.astype(hs_ref.dtype)

    # ---- conv2 -> bn2 -> +residual -> relu -----------------------------------------
    acc2 = conv3x3(hs_ref, w2_ref)
    res = x_ref[:, pl.ds(lead, TL)].astype(jnp.float32)   # interior window = residual
    out = jnp.maximum(acc2 * s2 + b2 + res, 0.0)

    # One wide, lane-dense bf16 store (TL is a multiple of 128).
    out_ref[...] = out.astype(out_ref.dtype)


def basic_block_forward(x, w1, g1, be1, m1, v1, w2, g2, be2, m2, v2,
                        eps=1e-5, batch_block=None, out_dtype=jnp.bfloat16):
    """x: (N, Cin, H, W) f32.  w1/w2: (Cout, Cin, 3, 3) OIHW (PyTorch layout)."""
    N, Cin, H, W = x.shape
    Cout = w1.shape[0]
    assert w1.shape == (Cout, Cin, 3, 3) and w2.shape == (Cout, Cout, 3, 3)
    assert Cin == Cout, "BasicBlock without downsample requires inplanes == planes"
    C = Cin

    CP = _round_up(C, 16)                       # bf16 native sublane tile
    W2 = W + 2
    L = H * W2
    PADLEN = _round_up((H + 2) * W2, 128)       # lanes per padded image, 128-aligned
    EXTRA = _round_up(2 * W2 + 2, 128)          # trailing slack so tap windows stay in-bounds

    # Per-step batch size: fill a few MB per block (sized from VMEM when queryable),
    # but keep >= 2 grid steps so the "parallel" axis can use both TCs on v7x.
    if batch_block is None:
        try:
            vmem_cap = pltpu.get_tpu_info().vmem_capacity_bytes
        except Exception:
            vmem_cap = 64 * 1024 * 1024
        budget = min(4 * 1024 * 1024, vmem_cap // 16)
        per_img = CP * PADLEN * 16              # rough bytes/image incl. f32 temps
        cands = [d for d in range(1, N + 1) if N % d == 0 and d * per_img <= budget]
        batch_block = max(cands) if cands else 1
        if N >= 2 and N // batch_block < 2:
            smaller = [d for d in cands if N // d >= 2]
            if smaller:
                batch_block = max(smaller)
    bN = batch_block
    assert N % bN == 0
    nsteps = N // bN
    TL = bN * PADLEN
    BLKX = TL + EXTRA

    # ---- input: bf16, channel-pad to CP, spatial zero-pad, flatten each padded image
    # to PADLEN lanes, fold the bN images of a grid step onto the lane axis.
    xb = jnp.pad(x.astype(jnp.bfloat16), ((0, 0), (0, CP - C), (1, 1), (1, 1)))
    xb = xb.reshape(nsteps, bN, CP, H + 2, W2).transpose(0, 2, 1, 3, 4)
    xb = xb.reshape(nsteps, CP, bN, (H + 2) * W2)
    xb = jnp.pad(xb, ((0, 0), (0, 0), (0, 0), (0, PADLEN - (H + 2) * W2)))
    xb = xb.reshape(nsteps, CP, TL)
    xb = jnp.pad(xb, ((0, 0), (0, 0), (0, EXTRA)))
    xq = xb.reshape(nsteps * CP, BLKX)

    # Fold BN (inference mode) into per-channel scale / bias (sublane broadcast).
    def fold_bn(g, b, m, v):
        inv = 1.0 / jnp.sqrt(v.astype(jnp.float32) + eps)
        s = g.astype(jnp.float32) * inv
        t = b.astype(jnp.float32) - m.astype(jnp.float32) * s
        s = jnp.pad(s, (0, CP - C)).reshape(CP, 1)
        t = jnp.pad(t, (0, CP - C)).reshape(CP, 1)
        return s, t

    s1, b1 = fold_bn(g1, be1, m1, v1)
    s2, b2 = fold_bn(g2, be2, m2, v2)

    # Weights: OIHW -> (kh, Cout, kw*Cin): each kh slice is a ready K-stacked MXU LHS.
    def prep_w(w):
        wp = jnp.pad(w, ((0, CP - C), (0, CP - C), (0, 0), (0, 0)))
        return jnp.transpose(wp, (2, 0, 3, 1)).reshape(3, CP, 3 * CP).astype(jnp.bfloat16)

    w1r = prep_w(w1)
    w2r = prep_w(w2)

    kernel = functools.partial(_basic_block_kernel, H=H, W=W, PADLEN=PADLEN, TL=TL)
    out = pl.pallas_call(
        kernel,
        out_shape=jax.ShapeDtypeStruct((nsteps * CP, TL), jnp.bfloat16),
        grid_spec=pltpu.PrefetchScalarGridSpec(
            num_scalar_prefetch=0,
            grid=(nsteps,),
            in_specs=[
                pl.BlockSpec((CP, BLKX), lambda n: (n, 0)),
                pl.BlockSpec((3, CP, 3 * CP), lambda n: (0, 0, 0)),
                pl.BlockSpec((CP, 1), lambda n: (0, 0)),
                pl.BlockSpec((CP, 1), lambda n: (0, 0)),
                pl.BlockSpec((3, CP, 3 * CP), lambda n: (0, 0, 0)),
                pl.BlockSpec((CP, 1), lambda n: (0, 0)),
                pl.BlockSpec((CP, 1), lambda n: (0, 0)),
            ],
            out_specs=pl.BlockSpec((CP, TL), lambda n: (n, 0)),
            scratch_shapes=[pltpu.VMEM((CP, BLKX), jnp.bfloat16)],
        ),
        compiler_params=pltpu.CompilerParams(
            dimension_semantics=("parallel",)),
    )(xq, w1r, s1, b1, w2r, s2, b2)

    # Unfold lanes -> NCHW, drop channel / spatial padding (one fused XLA pass).
    out = out.reshape(nsteps, CP, bN, PADLEN).transpose(0, 2, 1, 3)
    out = out.reshape(N, CP, PADLEN)[:, :C, :L].reshape(N, C, H, W2)[..., :W]
    return out.astype(out_dtype)


def _reference(x, w1, g1, be1, m1, v1, w2, g2, be2, m2, v2, eps=1e-5):
    """Pure-JAX reference in NCHW, mirroring the kernel's precision policy
    (bf16 conv operands / residual, f32 accumulation, f32 BN + ReLU, bf16 output)."""
    f32 = jnp.float32
    xb = x.astype(jnp.bfloat16).astype(f32)
    w1b = w1.astype(jnp.bfloat16).astype(f32)
    w2b = w2.astype(jnp.bfloat16).astype(f32)
    dn = ("NCHW", "OIHW", "NCHW")

    def bn(y, g, b, m, v):
        g, b, m, v = (t.reshape(1, -1, 1, 1) for t in (g, b, m, v))
        return (y - m) / jnp.sqrt(v + eps) * g + b

    o = lax.conv_general_dilated(xb, w1b, (1, 1), "SAME", dimension_numbers=dn)
    o = jnp.maximum(bn(o, g1, be1, m1, v1), 0.0)
    o = o.astype(jnp.bfloat16).astype(f32)            # kernel stores h1 as bf16
    o = lax.conv_general_dilated(o, w2b, (1, 1), "SAME", dimension_numbers=dn)
    o = bn(o, g2, be2, m2, v2)
    o = jnp.maximum(o + xb, 0.0)
    return o.astype(jnp.bfloat16).astype(f32)         # kernel stores the output as bf16


if __name__ == "__main__":
    # Small deterministic problem: BasicBlock(inplanes=8, planes=8, stride=1)
    N, C, H, W = 2, 8, 16, 16
    key = jax.random.PRNGKey(0)
    ks = jax.random.split(key, 11)

    x = jax.random.normal(ks[0], (N, C, H, W), jnp.float32)

    # conv weights in PyTorch OIHW layout (Cout, Cin, 3, 3)
    w1 = jax.random.normal(ks[1], (C, C, 3, 3), jnp.float32) * 0.1
    w2 = jax.random.normal(ks[2], (C, C, 3, 3), jnp.float32) * 0.1

    # BN params (inference stats)
    g1 = 1.0 + 0.1 * jax.random.normal(ks[3], (C,), jnp.float32)
    be1 = 0.1 * jax.random.normal(ks[4], (C,), jnp.float32)
    m1 = 0.1 * jax.random.normal(ks[5], (C,), jnp.float32)
    v1 = jnp.abs(jax.random.normal(ks[6], (C,), jnp.float32)) + 0.5

    g2 = 1.0 + 0.1 * jax.random.normal(ks[7], (C,), jnp.float32)
    be2 = 0.1 * jax.random.normal(ks[8], (C,), jnp.float32)
    m2 = 0.1 * jax.random.normal(ks[9], (C,), jnp.float32)
    v2 = jnp.abs(jax.random.normal(ks[10], (C,), jnp.float32)) + 0.5

    out = basic_block_forward(x, w1, g1, be1, m1, v1, w2, g2, be2, m2, v2)
    out = jax.block_until_ready(out)

    ref = _reference(x, w1, g1, be1, m1, v1, w2, g2, be2, m2, v2)
    assert out.shape == (N, C, H, W)
    out_f32 = out.astype(jnp.float32)
    err = float(jnp.max(jnp.abs(out_f32 - ref)))
    assert jnp.allclose(out_f32, ref, atol=2e-2, rtol=2e-2), \
        f"mismatch vs reference, max|diff|={err}"

    print("KERNEL_OK")
</pallas_src>

<mosaic_0001>
module attributes {stable_mosaic.version = 11 : i64} {
  func.func @_basic_block_kernel(%arg0: i32, %arg1: memref<16x512xbf16, #tpu.memory_space<vmem>>, %arg2: memref<3x16x48xbf16, #tpu.memory_space<vmem>>, %arg3: memref<16x1xf32, #tpu.memory_space<vmem>>, %arg4: memref<16x1xf32, #tpu.memory_space<vmem>>, %arg5: memref<3x16x48xbf16, #tpu.memory_space<vmem>>, %arg6: memref<16x1xf32, #tpu.memory_space<vmem>>, %arg7: memref<16x1xf32, #tpu.memory_space<vmem>>, %arg8: memref<16x384xbf16, #tpu.memory_space<vmem>>, %arg9: memref<16x512xbf16, #tpu.memory_space<vmem>>) attributes {dimension_semantics = [#tpu.dimension_semantics<parallel>], iteration_bounds = array<i64: 2>, scalar_prefetch = 0 : i64, scratch_operands = 1 : i64, tpu.core_type = #tpu.core_type<tc>, window_params = [{transform_indices = @transform_0, window_bounds = array<i64: 16, 512>}, {pipeline_mode = #tpu.pipeline_mode<synchronous>, transform_indices = @transform_1, window_bounds = array<i64: 3, 16, 48>}, {pipeline_mode = #tpu.pipeline_mode<synchronous>, transform_indices = @transform_2, window_bounds = array<i64: 16, 1>}, {pipeline_mode = #tpu.pipeline_mode<synchronous>, transform_indices = @transform_3, window_bounds = array<i64: 16, 1>}, {pipeline_mode = #tpu.pipeline_mode<synchronous>, transform_indices = @transform_4, window_bounds = array<i64: 3, 16, 48>}, {pipeline_mode = #tpu.pipeline_mode<synchronous>, transform_indices = @transform_5, window_bounds = array<i64: 16, 1>}, {pipeline_mode = #tpu.pipeline_mode<synchronous>, transform_indices = @transform_6, window_bounds = array<i64: 16, 1>}, {transform_indices = @transform_7, window_bounds = array<i64: 16, 384>}]} {
    %c0 = arith.constant 0 : index
    %c0_0 = arith.constant 0 : index
    %0 = vector.load %arg3[%c0, %c0_0] : memref<16x1xf32, #tpu.memory_space<vmem>>, vector<16x1xf32>
    %c0_1 = arith.constant 0 : index
    %c0_2 = arith.constant 0 : index
    %1 = vector.load %arg4[%c0_1, %c0_2] : memref<16x1xf32, #tpu.memory_space<vmem>>, vector<16x1xf32>
    %c0_3 = arith.constant 0 : index
    %c0_4 = arith.constant 0 : index
    %2 = vector.load %arg6[%c0_3, %c0_4] : memref<16x1xf32, #tpu.memory_space<vmem>>, vector<16x1xf32>
    %c0_5 = arith.constant 0 : index
    %c0_6 = arith.constant 0 : index
    %3 = vector.load %arg7[%c0_5, %c0_6] : memref<16x1xf32, #tpu.memory_space<vmem>>, vector<16x1xf32>
    %4 = tpu.iota {dimensions = array<i32: 1>} : vector<1x384xi32>
    %c384_i32 = arith.constant 384 : i32
    %c0_i32 = arith.constant 0 : i32
    %5 = arith.cmpi eq, %c384_i32, %c0_i32 : i32
    %c1_i32 = arith.constant 1 : i32
    %6 = arith.select %5, %c1_i32, %c384_i32 : i32
    %7 = vector.broadcast %6 : i32 to vector<1x384xi32>
    %8 = arith.remsi %4, %7 : vector<1x384xi32>
    %c0_i32_7 = arith.constant 0 : i32
    %9 = vector.broadcast %c0_i32_7 : i32 to vector<1x384xi32>
    %10 = arith.cmpi ne, %8, %9 : vector<1x384xi32>
    %c0_i32_8 = arith.constant 0 : i32
    %11 = vector.broadcast %c0_i32_8 : i32 to vector<1x384xi32>
    %12 = arith.cmpi slt, %8, %11 : vector<1x384xi32>
    %c0_i32_9 = arith.constant 0 : i32
    %13 = arith.cmpi slt, %6, %c0_i32_9 : i32
    %14 = vector.broadcast %13 : i1 to vector<1x384xi1>
    %15 = vector.broadcast %14 : vector<1x384xi1> to vector<1x384xi1>
    %16 = arith.xori %12, %15 : vector<1x384xi1>
    %17 = arith.andi %16, %10 : vector<1x384xi1>
    %18 = vector.broadcast %6 : i32 to vector<1x384xi32>
    %19 = arith.addi %8, %18 : vector<1x384xi32>
    %20 = arith.select %17, %19, %8 : vector<1x384xi1>, vector<1x384xi32>
    %c288_i32 = arith.constant 288 : i32
    %21 = vector.broadcast %c288_i32 : i32 to vector<1x384xi32>
    %22 = arith.cmpi slt, %20, %21 : vector<1x384xi32>
    %c18_i32 = arith.constant 18 : i32
    %c0_i32_10 = arith.constant 0 : i32
    %23 = arith.cmpi eq, %c18_i32, %c0_i32_10 : i32
    %c1_i32_11 = arith.constant 1 : i32
    %24 = arith.select %23, %c1_i32_11, %c18_i32 : i32
    %25 = vector.broadcast %24 : i32 to vector<1x384xi32>
    %26 = arith.remsi %20, %25 : vector<1x384xi32>
    %c0_i32_12 = arith.constant 0 : i32
    %27 = vector.broadcast %c0_i32_12 : i32 to vector<1x384xi32>
    %28 = arith.cmpi ne, %26, %27 : vector<1x384xi32>
    %c0_i32_13 = arith.constant 0 : i32
    %29 = vector.broadcast %c0_i32_13 : i32 to vector<1x384xi32>
    %30 = arith.cmpi slt, %26, %29 : vector<1x384xi32>
    %c0_i32_14 = arith.constant 0 : i32
    %31 = arith.cmpi slt, %24, %c0_i32_14 : i32
    %32 = vector.broadcast %31 : i1 to vector<1x384xi1>
    %33 = vector.broadcast %32 : vector<1x384xi1> to vector<1x384xi1>
    %34 = arith.xori %30, %33 : vector<1x384xi1>
    %35 = arith.andi %34, %28 : vector<1x384xi1>
    %36 = vector.broadcast %24 : i32 to vector<1x384xi32>
    %37 = arith.addi %26, %36 : vector<1x384xi32>
    %38 = arith.select %35, %37, %26 : vector<1x384xi1>, vector<1x384xi32>
    %c16_i32 = arith.constant 16 : i32
    %39 = vector.broadcast %c16_i32 : i32 to vector<1x384xi32>
    %40 = arith.cmpi slt, %38, %39 : vector<1x384xi32>
    %41 = arith.andi %22, %40 : vector<1x384xi1>
    %c0_15 = arith.constant 0 : index
    %c0_16 = arith.constant 0 : index
    %42 = vector.load %arg1[%c0_15, %c0_16] : memref<16x512xbf16, #tpu.memory_space<vmem>>, vector<16x384xbf16>
    %c0_17 = arith.constant 0 : index
    %c1 = arith.constant 1 : index
    %43 = vector.load %arg1[%c0_17, %c1] : memref<16x512xbf16, #tpu.memory_space<vmem>>, vector<16x384xbf16>
    %c0_18 = arith.constant 0 : index
    %c2 = arith.constant 2 : index
    %44 = vector.load %arg1[%c0_18, %c2] : memref<16x512xbf16, #tpu.memory_space<vmem>>, vector<16x384xbf16>
    %45 = tpu.concatenate %42, %43, %44 in 0 : vector<16x384xbf16>, vector<16x384xbf16>, vector<16x384xbf16> -> vector<48x384xbf16>
    %c0_19 = arith.constant 0 : index
    %c0_20 = arith.constant 0 : index
    %c0_21 = arith.constant 0 : index
    %46 = vector.load %arg2[%c0_19, %c0_20, %c0_21] : memref<3x16x48xbf16, #tpu.memory_space<vmem>>, vector<1x16x48xbf16>
    %47 = vector.shape_cast %46 : vector<1x16x48xbf16> to vector<16x48xbf16>
    %cst = arith.constant dense<0.000000e+00> : vector<16x384xf32>
    %48 = tpu.matmul %47, %45, %cst {dimension_numbers = #tpu.dot_dimension_numbers<[1], [0], [0], [1], [0, 0, 1, 1], [], []>} : vector<16x48xbf16>, vector<48x384xbf16>, vector<16x384xf32> -> vector<16x384xf32>
    %c0_22 = arith.constant 0 : index
    %c18 = arith.constant 18 : index
    %49 = vector.load %arg1[%c0_22, %c18] : memref<16x512xbf16, #tpu.memory_space<vmem>>, vector<16x384xbf16>
    %c0_23 = arith.constant 0 : index
    %c19 = arith.constant 19 : index
    %50 = vector.load %arg1[%c0_23, %c19] : memref<16x512xbf16, #tpu.memory_space<vmem>>, vector<16x384xbf16>
    %c0_24 = arith.constant 0 : index
    %c20 = arith.constant 20 : index
    %51 = vector.load %arg1[%c0_24, %c20] : memref<16x512xbf16, #tpu.memory_space<vmem>>, vector<16x384xbf16>
    %52 = tpu.concatenate %49, %50, %51 in 0 : vector<16x384xbf16>, vector<16x384xbf16>, vector<16x384xbf16> -> vector<48x384xbf16>
    %c1_25 = arith.constant 1 : index
    %c0_26 = arith.constant 0 : index
    %c0_27 = arith.constant 0 : index
    %53 = vector.load %arg2[%c1_25, %c0_26, %c0_27] : memref<3x16x48xbf16, #tpu.memory_space<vmem>>, vector<1x16x48xbf16>
    %54 = vector.shape_cast %53 : vector<1x16x48xbf16> to vector<16x48xbf16>
    %cst_28 = arith.constant dense<0.000000e+00> : vector<16x384xf32>
    %55 = tpu.matmul %54, %52, %cst_28 {dimension_numbers = #tpu.dot_dimension_numbers<[1], [0], [0], [1], [0, 0, 1, 1], [], []>} : vector<16x48xbf16>, vector<48x384xbf16>, vector<16x384xf32> -> vector<16x384xf32>
    %56 = arith.addf %48, %55 : vector<16x384xf32>
    %c0_29 = arith.constant 0 : index
    %c36 = arith.constant 36 : index
    %57 = vector.load %arg1[%c0_29, %c36] : memref<16x512xbf16, #tpu.memory_space<vmem>>, vector<16x384xbf16>
    %c0_30 = arith.constant 0 : index
    %c37 = arith.constant 37 : index
    %58 = vector.load %arg1[%c0_30, %c37] : memref<16x512xbf16, #tpu.memory_space<vmem>>, vector<16x384xbf16>
    %c0_31 = arith.constant 0 : index
    %c38 = arith.constant 38 : index
    %59 = vector.load %arg1[%c0_31, %c38] : memref<16x512xbf16, #tpu.memory_space<vmem>>, vector<16x384xbf16>
    %60 = tpu.concatenate %57, %58, %59 in 0 : vector<16x384xbf16>, vector<16x384xbf16>, vector<16x384xbf16> -> vector<48x384xbf16>
    %c2_32 = arith.constant 2 : index
    %c0_33 = arith.constant 0 : index
    %c0_34 = arith.constant 0 : index
    %61 = vector.load %arg2[%c2_32, %c0_33, %c0_34] : memref<3x16x48xbf16, #tpu.memory_space<vmem>>, vector<1x16x48xbf16>
    %62 = vector.shape_cast %61 : vector<1x16x48xbf16> to vector<16x48xbf16>
    %cst_35 = arith.constant dense<0.000000e+00> : vector<16x384xf32>
    %63 = tpu.matmul %62, %60, %cst_35 {dimension_numbers = #tpu.dot_dimension_numbers<[1], [0], [0], [1], [0, 0, 1, 1], [], []>} : vector<16x48xbf16>, vector<48x384xbf16>, vector<16x384xf32> -> vector<16x384xf32>
    %64 = arith.addf %56, %63 : vector<16x384xf32>
    %65 = vector.broadcast %0 : vector<16x1xf32> to vector<16x384xf32>
    %66 = arith.mulf %64, %65 : vector<16x384xf32>
    %67 = vector.broadcast %1 : vector<16x1xf32> to vector<16x384xf32>
    %68 = arith.addf %66, %67 : vector<16x384xf32>
    %cst_36 = arith.constant 0.000000e+00 : f32
    %69 = vector.broadcast %cst_36 : f32 to vector<16x384xf32>
    %70 = arith.maximumf %68, %69 : vector<16x384xf32>
    %cst_37 = arith.constant 0.000000e+00 : f32
    %71 = vector.shape_cast %41 : vector<1x384xi1> to vector<1x384xi1>
    %72 = vector.broadcast %71 : vector<1x384xi1> to vector<16x384xi1>
    %73 = vector.broadcast %cst_37 : f32 to vector<16x384xf32>
    %74 = arith.select %72, %70, %73 : vector<16x384xi1>, vector<16x384xf32>
    %cst_38 = arith.constant 0.000000e+00 : bf16
    %75 = vector.broadcast %cst_38 : bf16 to vector<16x19xbf16>
    %c0_39 = arith.constant 0 : index
    %c0_40 = arith.constant 0 : index
    %76 = vector.load %arg9[%c0_39, %c0_40] : memref<16x512xbf16, #tpu.memory_space<vmem>>, vector<16x19xbf16>
    tpu.vector_store %arg9[%c0_39, %c0_40], %75 {strides = array<i32>} : memref<16x512xbf16, #tpu.memory_space<vmem>>, vector<16x19xbf16>,
    %cst_41 = arith.constant 0.000000e+00 : bf16
    %77 = vector.broadcast %cst_41 : bf16 to vector<16x109xbf16>
    %c0_42 = arith.constant 0 : index
    %c403 = arith.constant 403 : index
    %78 = vector.load %arg9[%c0_42, %c403] : memref<16x512xbf16, #tpu.memory_space<vmem>>, vector<16x109xbf16>
    tpu.vector_store %arg9[%c0_42, %c403], %77 {strides = array<i32>} : memref<16x512xbf16, #tpu.memory_space<vmem>>, vector<16x109xbf16>,
    %79 = arith.truncf %74 : vector<16x384xf32> to vector<16x384xbf16>
    %c0_43 = arith.constant 0 : index
    %c19_44 = arith.constant 19 : index
    %80 = vector.load %arg9[%c0_43, %c19_44] : memref<16x512xbf16, #tpu.memory_space<vmem>>, vector<16x384xbf16>
    tpu.vector_store %arg9[%c0_43, %c19_44], %79 {strides = array<i32>} : memref<16x512xbf16, #tpu.memory_space<vmem>>, vector<16x384xbf16>,
    %c0_45 = arith.constant 0 : index
    %c0_46 = arith.constant 0 : index
    %81 = vector.load %arg9[%c0_45, %c0_46] : memref<16x512xbf16, #tpu.memory_space<vmem>>, vector<16x384xbf16>
    %c0_47 = arith.constant 0 : index
    %c1_48 = arith.constant 1 : index
    %82 = vector.load %arg9[%c0_47, %c1_48] : memref<16x512xbf16, #tpu.memory_space<vmem>>, vector<16x384xbf16>
    %c0_49 = arith.constant 0 : index
    %c2_50 = arith.constant 2 : index
    %83 = vector.load %arg9[%c0_49, %c2_50] : memref<16x512xbf16, #tpu.memory_space<vmem>>, vector<16x384xbf16>
    %84 = tpu.concatenate %81, %82, %83 in 0 : vector<16x384xbf16>, vector<16x384xbf16>, vector<16x384xbf16> -> vector<48x384xbf16>
    %c0_51 = arith.constant 0 : index
    %c0_52 = arith.constant 0 : index
    %c0_53 = arith.constant 0 : index
    %85 = vector.load %arg5[%c0_51, %c0_52, %c0_53] : memref<3x16x48xbf16, #tpu.memory_space<vmem>>, vector<1x16x48xbf16>
    %86 = vector.shape_cast %85 : vector<1x16x48xbf16> to vector<16x48xbf16>
    %cst_54 = arith.constant dense<0.000000e+00> : vector<16x384xf32>
    %87 = tpu.matmul %86, %84, %cst_54 {dimension_numbers = #tpu.dot_dimension_numbers<[1], [0], [0], [1], [0, 0, 1, 1], [], []>} : vector<16x48xbf16>, vector<48x384xbf16>, vector<16x384xf32> -> vector<16x384xf32>
    %c0_55 = arith.constant 0 : index
    %c18_56 = arith.constant 18 : index
    %88 = vector.load %arg9[%c0_55, %c18_56] : memref<16x512xbf16, #tpu.memory_space<vmem>>, vector<16x384xbf16>
    %c0_57 = arith.constant 0 : index
    %c19_58 = arith.constant 19 : index
    %89 = vector.load %arg9[%c0_57, %c19_58] : memref<16x512xbf16, #tpu.memory_space<vmem>>, vector<16x384xbf16>
    %c0_59 = arith.constant 0 : index
    %c20_60 = arith.constant 20 : index
    %90 = vector.load %arg9[%c0_59, %c20_60] : memref<16x512xbf16, #tpu.memory_space<vmem>>, vector<16x384xbf16>
    %91 = tpu.concatenate %88, %89, %90 in 0 : vector<16x384xbf16>, vector<16x384xbf16>, vector<16x384xbf16> -> vector<48x384xbf16>
    %c1_61 = arith.constant 1 : index
    %c0_62 = arith.constant 0 : index
    %c0_63 = arith.constant 0 : index
    %92 = vector.load %arg5[%c1_61, %c0_62, %c0_63] : memref<3x16x48xbf16, #tpu.memory_space<vmem>>, vector<1x16x48xbf16>
    %93 = vector.shape_cast %92 : vector<1x16x48xbf16> to vector<16x48xbf16>
    %cst_64 = arith.constant dense<0.000000e+00> : vector<16x384xf32>
    %94 = tpu.matmul %93, %91, %cst_64 {dimension_numbers = #tpu.dot_dimension_numbers<[1], [0], [0], [1], [0, 0, 1, 1], [], []>} : vector<16x48xbf16>, vector<48x384xbf16>, vector<16x384xf32> -> vector<16x384xf32>
    %95 = arith.addf %87, %94 : vector<16x384xf32>
    %c0_65 = arith.constant 0 : index
    %c36_66 = arith.constant 36 : index
    %96 = vector.load %arg9[%c0_65, %c36_66] : memref<16x512xbf16, #tpu.memory_space<vmem>>, vector<16x384xbf16>
    %c0_67 = arith.constant 0 : index
    %c37_68 = arith.constant 37 : index
    %97 = vector.load %arg9[%c0_67, %c37_68] : memref<16x512xbf16, #tpu.memory_space<vmem>>, vector<16x384xbf16>
    %c0_69 = arith.constant 0 : index
    %c38_70 = arith.constant 38 : index
    %98 = vector.load %arg9[%c0_69, %c38_70] : memref<16x512xbf16, #tpu.memory_space<vmem>>, vector<16x384xbf16>
    %99 = tpu.concatenate %96, %97, %98 in 0 : vector<16x384xbf16>, vector<16x384xbf16>, vector<16x384xbf16> -> vector<48x384xbf16>
    %c2_71 = arith.constant 2 : index
    %c0_72 = arith.constant 0 : index
    %c0_73 = arith.constant 0 : index
    %100 = vector.load %arg5[%c2_71, %c0_72, %c0_73] : memref<3x16x48xbf16, #tpu.memory_space<vmem>>, vector<1x16x48xbf16>
    %101 = vector.shape_cast %100 : vector<1x16x48xbf16> to vector<16x48xbf16>
    %cst_74 = arith.constant dense<0.000000e+00> : vector<16x384xf32>
    %102 = tpu.matmul %101, %99, %cst_74 {dimension_numbers = #tpu.dot_dimension_numbers<[1], [0], [0], [1], [0, 0, 1, 1], [], []>} : vector<16x48xbf16>, vector<48x384xbf16>, vector<16x384xf32> -> vector<16x384xf32>
    %103 = arith.addf %95, %102 : vector<16x384xf32>
    %c0_75 = arith.constant 0 : index
    %c19_76 = arith.constant 19 : index
    %104 = vector.load %arg1[%c0_75, %c19_76] : memref<16x512xbf16, #tpu.memory_space<vmem>>, vector<16x384xbf16>
    %105 = arith.extf %104 : vector<16x384xbf16> to vector<16x384xf32>
    %106 = vector.broadcast %2 : vector<16x1xf32> to vector<16x384xf32>
    %107 = arith.mulf %103, %106 : vector<16x384xf32>
    %108 = vector.broadcast %3 : vector<16x1xf32> to vector<16x384xf32>
    %109 = arith.addf %107, %108 : vector<16x384xf32>
    %110 = arith.addf %109, %105 : vector<16x384xf32>
    %cst_77 = arith.constant 0.000000e+00 : f32
    %111 = vector.broadcast %cst_77 : f32 to vector<16x384xf32>
    %112 = arith.maximumf %110, %111 : vector<16x384xf32>
    %113 = arith.truncf %112 : vector<16x384xf32> to vector<16x384xbf16>
    %c0_78 = arith.constant 0 : index
    %c0_79 = arith.constant 0 : index
    %114 = vector.load %arg8[%c0_78, %c0_79] : memref<16x384xbf16, #tpu.memory_space<vmem>>, vector<16x384xbf16>
    tpu.vector_store %arg8[%c0_78, %c0_79], %113 {strides = array<i32>} : memref<16x384xbf16, #tpu.memory_space<vmem>>, vector<16x384xbf16>,
    return
  }
  func.func @transform_0(%arg0: i32) -> (i32, i32) {
    %c0_i32 = arith.constant 0 : i32
    %c0_i32_0 = arith.constant 0 : i32
    return %arg0, %c0_i32 : i32, i32
  }
  func.func @transform_1(%arg0: i32) -> (i32, i32, i32) {
    %c0_i32 = arith.constant 0 : i32
    %c0_i32_0 = arith.constant 0 : i32
    %c0_i32_1 = arith.constant 0 : i32
    %c0_i32_2 = arith.constant 0 : i32
    return %c0_i32, %c0_i32_0, %c0_i32_1 : i32, i32, i32
  }
  func.func @transform_2(%arg0: i32) -> (i32, i32) {
    %c0_i32 = arith.constant 0 : i32
    %c0_i32_0 = arith.constant 0 : i32
    %c0_i32_1 = arith.constant 0 : i32
    return %c0_i32, %c0_i32_0 : i32, i32
  }
  func.func @transform_3(%arg0: i32) -> (i32, i32) {
    %c0_i32 = arith.constant 0 : i32
    %c0_i32_0 = arith.constant 0 : i32
    %c0_i32_1 = arith.constant 0 : i32
    return %c0_i32, %c0_i32_0 : i32, i32
  }
  func.func @transform_4(%arg0: i32) -> (i32, i32, i32) {
    %c0_i32 = arith.constant 0 : i32
    %c0_i32_0 = arith.constant 0 : i32
    %c0_i32_1 = arith.constant 0 : i32
    %c0_i32_2 = arith.constant 0 : i32
    return %c0_i32, %c0_i32_0, %c0_i32_1 : i32, i32, i32
  }
  func.func @transform_5(%arg0: i32) -> (i32, i32) {
    %c0_i32 = arith.constant 0 : i32
    %c0_i32_0 = arith.constant 0 : i32
    %c0_i32_1 = arith.constant 0 : i32
    return %c0_i32, %c0_i32_0 : i32, i32
  }
  func.func @transform_6(%arg0: i32) -> (i32, i32) {
    %c0_i32 = arith.constant 0 : i32
    %c0_i32_0 = arith.constant 0 : i32
    %c0_i32_1 = arith.constant 0 : i32
    return %c0_i32, %c0_i32_0 : i32, i32
  }
  func.func @transform_7(%arg0: i32) -> (i32, i32) {
    %c0_i32 = arith.constant 0 : i32
    %c0_i32_0 = arith.constant 0 : i32
    return %arg0, %c0_i32 : i32, i32
  }
}

</mosaic_0001>

<llo_original>
// kernel: tpu_custom_call.1
$region0: #{tpu_custom_call.1}
  #allocation0 [shape = 'u32[]', space=smem, size = 0x4, offset = 0x4, fixed_abs, tag = 'smem constant byte address 0x4 - core index']
  #allocation1 [shape = 'u32[72,128]{1,0:T(1,128)}', space=vmem, size = 0x9000, scoped, tag = 'internal scratch']
  #allocation2 [shape = 'bf16[16,512]{1,0:T(8,128)(2,1)}', space=vmem, size = 0x4000, scoped, tag = 'scratch operand']
  %s0 = inlined_call_operand.hbm [shape: bf16[32,512], index: 0, kind: input, shape index: {}]
  %s1 = inlined_call_operand.vmem [shape: bf16[3,16,48], index: 1, kind: input, shape index: {}]
  %s2 = inlined_call_operand.vmem [shape: f32[16,1], index: 2, kind: input, shape index: {}]
  %s3 = inlined_call_operand.vmem [shape: f32[16,1], index: 3, kind: input, shape index: {}]
  %s4 = inlined_call_operand.vmem [shape: bf16[3,16,48], index: 4, kind: input, shape index: {}]
  %s5 = inlined_call_operand.vmem [shape: f32[16,1], index: 5, kind: input, shape index: {}]
  %s6 = inlined_call_operand.vmem [shape: f32[16,1], index: 6, kind: input, shape index: {}]
  %s7 = inlined_call_operand.hbm [shape: bf16[32,384], index: 7, kind: output, shape index: {}]
  %s8 = sld [smem:[#allocation0]]
  $region65: #{tpu_custom_call.1} parent=0
    _
  %s10 = ssub.s32 1, %s8
  %s11 = scalar_select 0, %s10, %s8
  $region1: #{tpu_custom_call.1} parent=0
    #allocation3 [shape = 'u8[32768]{0}', space=vmem, size = 0x8000, scoped, tag = 'input window, operand 0']
    #allocation4 [shape = 's32[2]{0}', space=sflag, size = 0x8, scoped, tag = 'scoped memory for tpu_custom_call.1']
    #allocation5 [shape = 's32[2]{0}', space=sflag, size = 0x8, scoped, tag = 'scoped memory for tpu_custom_call.1']
    #allocation6 [shape = 'u8[24576]{0}', space=vmem, size = 0x6000, scoped, tag = 'output window, operand 0']
    %12 = vsyncpa [#allocation4], 0
    %s13 = scalar_lea.sflag [#allocation4], 1
    %14 = vsyncpa %s13, 0
    %15 = vsyncpa [#allocation5], 0
    %s16 = scalar_lea.sflag [#allocation5], 1
    %17 = vsyncpa %s16, 0
    loop: start=0, step=1, limit=4
    $region2: #{tpu_custom_call.1} parent=1 // loop_pre_header
      _
    $region3: #{tpu_custom_call.1} parent=1 // loop_header
      %s19 = sphi 0, %s23
      %p20 = scmp.ge.s32.totalorder %s19, 4
      %s29 = sphi 0, %s31
      %s32 = sphi 0, %s29
      %s33 = sphi 0, %s32
      %s49 = sphi 0, %s33
      %s53 = sphi 0, %s53
      %s55 = sphi 0, %s53
      %s56 = sphi 0, %s55
      %s70 = sphi 0, %s56
      %s74 = sphi 0, %s74
      %s76 = sphi 0, %s74
      %s77 = sphi 0, %s76
      %s91 = sphi 0, %s77
      %s95 = sphi 0, %s95
      %s97 = sphi 0, %s95
      %s98 = sphi 0, %s97
      %s112 = sphi 0, %s98
      %s116 = sphi 0, %s116
      %s118 = sphi 0, %s116
      %s119 = sphi 0, %s118
      %s133 = sphi 0, %s119
      %s137 = sphi 0, %s137
      %s139 = sphi 0, %s137
      %s140 = sphi 0, %s139
      %s154 = sphi 0, %s140
      %s158 = sphi 0, %s158
      %s160 = sphi 0, %s158
      %s161 = sphi 0, %s160
      %s175 = sphi 0, %s161
      %s181 = sphi 0, %s183
      %s184 = sphi 0, %s181
      %s185 = sphi 0, %s184
      %s201 = sphi 0, %s185
    $region4: #{tpu_custom_call.1} parent=1 // loop_header_branch
      %22 = sbr.rel (%p20) target = $region8
    $region5: #{tpu_custom_call.1} parent=1 // loop_body
      %s24 = ssub.s32 %s19, 1
      %s25 = ssub.s32 %s19, 2
      %s26 = sadd.s32 %s19, 1
      %s27 = ssub.s32 %s19, %s26
      %p28 = scmp.eq.s32.totalorder %s27, 0
      %s30 = sadd.s32 %s29, 1
      %s31 = scalar_select %p28, %s29, %s30
      %p34 = pneg %p28
      %p35 = scmp.eq.s32.totalorder %s19, 1
      %p36 = por %p34, %p35
      %p37 = scmp.ne.s32.totalorder %s29, %s32
      %p38 = scmp.eq.s32.totalorder %s19, 0
      %p39 = por %p37, %p38
      %p40 = scmp.ne.s32.totalorder %s29, %s32
      %p41 = scmp.eq.s32.totalorder %s24, 1
      %p42 = por %p40, %p41
      %p43 = scmp.ne.s32.totalorder %s32, %s33
      %p44 = scmp.eq.s32.totalorder %s24, 0
      %p45 = por %p43, %p44
      %p46 = scmp.ne.s32.totalorder %s32, %s33
      %p47 = scmp.eq.s32.totalorder %s25, 1
      %p48 = por %p46, %p47
      %p50 = scmp.ne.s32.totalorder %s33, %s49
      %p51 = scmp.eq.s32.totalorder %s25, 0
      %p52 = por %p50, %p51
      %s54 = sadd.s32 %s53, 1
      %p57 = scmp.eq.s32.totalorder %s19, 1
      %p58 = scmp.ne.s32.totalorder %s53, %s55
      %p59 = scmp.eq.s32.totalorder %s19, 0
      %p60 = por %p58, %p59
      %p61 = scmp.ne.s32.totalorder %s53, %s55
      %p62 = scmp.eq.s32.totalorder %s24, 1
      %p63 = por %p61, %p62
      %p64 = scmp.ne.s32.totalorder %s55, %s56
      %p65 = scmp.eq.s32.totalorder %s24, 0
      %p66 = por %p64, %p65
      %p67 = scmp.ne.s32.totalorder %s55, %s56
      %p68 = scmp.eq.s32.totalorder %s25, 1
      %p69 = por %p67, %p68
      %p71 = scmp.ne.s32.totalorder %s56, %s70
      %p72 = scmp.eq.s32.totalorder %s25, 0
      %p73 = por %p71, %p72
      %s75 = sadd.s32 %s74, 1
      %p78 = scmp.eq.s32.totalorder %s19, 1
      %p79 = scmp.ne.s32.totalorder %s74, %s76
      %p80 = scmp.eq.s32.totalorder %s19, 0
      %p81 = por %p79, %p80
      %p82 = scmp.ne.s32.totalorder %s74, %s76
      %p83 = scmp.eq.s32.totalorder %s24, 1
      %p84 = por %p82, %p83
      %p85 = scmp.ne.s32.totalorder %s76, %s77
      %p86 = scmp.eq.s32.totalorder %s24, 0
      %p87 = por %p85, %p86
      %p88 = scmp.ne.s32.totalorder %s76, %s77
      %p89 = scmp.eq.s32.totalorder %s25, 1
      %p90 = por %p88, %p89
      %p92 = scmp.ne.s32.totalorder %s77, %s91
      %p93 = scmp.eq.s32.totalorder %s25, 0
      %p94 = por %p92, %p93
      %s96 = sadd.s32 %s95, 1
      %p99 = scmp.eq.s32.totalorder %s19, 1
      %p100 = scmp.ne.s32.totalorder %s95, %s97
      %p101 = scmp.eq.s32.totalorder %s19, 0
      %p102 = por %p100, %p101
      %p103 = scmp.ne.s32.totalorder %s95, %s97
      %p104 = scmp.eq.s32.totalorder %s24, 1
      %p105 = por %p103, %p104
      %p106 = scmp.ne.s32.totalorder %s97, %s98
      %p107 = scmp.eq.s32.totalorder %s24, 0
      %p108 = por %p106, %p107
      %p109 = scmp.ne.s32.totalorder %s97, %s98
      %p110 = scmp.eq.s32.totalorder %s25, 1
      %p111 = por %p109, %p110
      %p113 = scmp.ne.s32.totalorder %s98, %s112
      %p114 = scmp.eq.s32.totalorder %s25, 0
      %p115 = por %p113, %p114
      %s117 = sadd.s32 %s116, 1
      %p120 = scmp.eq.s32.totalorder %s19, 1
      %p121 = scmp.ne.s32.totalorder %s116, %s118
      %p122 = scmp.eq.s32.totalorder %s19, 0
      %p123 = por %p121, %p122
      %p124 = scmp.ne.s32.totalorder %s116, %s118
      %p125 = scmp.eq.s32.totalorder %s24, 1
      %p126 = por %p124, %p125
      %p127 = scmp.ne.s32.totalorder %s118, %s119
      %p128 = scmp.eq.s32.totalorder %s24, 0
      %p129 = por %p127, %p128
      %p130 = scmp.ne.s32.totalorder %s118, %s119
      %p131 = scmp.eq.s32.totalorder %s25, 1
      %p132 = por %p130, %p131
      %p134 = scmp.ne.s32.totalorder %s119, %s133
      %p135 = scmp.eq.s32.totalorder %s25, 0
      %p136 = por %p134, %p135
      %s138 = sadd.s32 %s137, 1
      %p141 = scmp.eq.s32.totalorder %s19, 1
      %p142 = scmp.ne.s32.totalorder %s137, %s139
      %p143 = scmp.eq.s32.totalorder %s19, 0
      %p144 = por %p142, %p143
      %p145 = scmp.ne.s32.totalorder %s137, %s139
      %p146 = scmp.eq.s32.totalorder %s24, 1
      %p147 = por %p145, %p146
      %p148 = scmp.ne.s32.totalorder %s139, %s140
      %p149 = scmp.eq.s32.totalorder %s24, 0
      %p150 = por %p148, %p149
      %p151 = scmp.ne.s32.totalorder %s139, %s140
      %p152 = scmp.eq.s32.totalorder %s25, 1
      %p153 = por %p151, %p152
      %p155 = scmp.ne.s32.totalorder %s140, %s154
      %p156 = scmp.eq.s32.totalorder %s25, 0
      %p157 = por %p155, %p156
      %s159 = sadd.s32 %s158, 1
      %p162 = scmp.eq.s32.totalorder %s19, 1
      %p163 = scmp.ne.s32.totalorder %s158, %s160
      %p164 = scmp.eq.s32.totalorder %s19, 0
      %p165 = por %p163, %p164
      %p166 = scmp.ne.s32.totalorder %s158, %s160
      %p167 = scmp.eq.s32.totalorder %s24, 1
      %p168 = por %p166, %p167
      %p169 = scmp.ne.s32.totalorder %s160, %s161
      %p170 = scmp.eq.s32.totalorder %s24, 0
      %p171 = por %p169, %p170
      %p172 = scmp.ne.s32.totalorder %s160, %s161
      %p173 = scmp.eq.s32.totalorder %s25, 1
      %p174 = por %p172, %p173
      %p176 = scmp.ne.s32.totalorder %s161, %s175
      %p177 = scmp.eq.s32.totalorder %s25, 0
      %p178 = por %p176, %p177
      %s179 = ssub.s32 %s19, %s26
      %p180 = scmp.eq.s32.totalorder %s179, 0
      %s182 = sadd.s32 %s181, 1
      %s183 = scalar_select %p180, %s181, %s182
      %p186 = pneg %p180
      %p187 = scmp.eq.s32.totalorder %s19, 1
      %p188 = por %p186, %p187
      %p189 = scmp.ne.s32.totalorder %s181, %s184
      %p190 = scmp.eq.s32.totalorder %s19, 0
      %p191 = por %p189, %p190
      %p192 = scmp.ne.s32.totalorder %s181, %s184
      %p193 = scmp.eq.s32.totalorder %s24, 1
      %p194 = por %p192, %p193
      %p195 = scmp.ne.s32.totalorder %s184, %s185
      %p196 = scmp.eq.s32.totalorder %s24, 0
      %p197 = por %p195, %p196
      %p198 = scmp.ne.s32.totalorder %s184, %s185
      %p199 = scmp.eq.s32.totalorder %s25, 1
      %p200 = por %p198, %p199
      %p202 = scmp.ne.s32.totalorder %s185, %s201
      %p203 = scmp.eq.s32.totalorder %s25, 0
      %p204 = por %p202, %p203
      %p205 = scmp.le.s32.totalorder 1, %s19
      %p206 = scmp.lt.s32.totalorder %s19, 3
      %p207 = pnand %p205, %p206
      %p208 = pneg %p207
      // Predicated region
      $region9: #{tpu_custom_call.1} parent=5 // pred_check
        _
      $region10: #{tpu_custom_call.1} parent=5 // pred_check_branch
        %210 = sbr.rel (%p207) target = $region12
      $region11: #{tpu_custom_call.1} parent=5 // pred_region
        %s211 = ssub.s32 %s19, 1
        // Predicated region
        $region13: #{tpu_custom_call.1} parent=11 // pred_check
          %p212 = pneg %p66
        $region14: #{tpu_custom_call.1} parent=11 // pred_check_branch
          %214 = sbr.rel (%p212) target = $region16
        $region15: #{tpu_custom_call.1} parent=11 // pred_region
          _
        $region16: #{tpu_custom_call.1} parent=11 // pred_fallthru
          _
        // Predicated region
        $region17: #{tpu_custom_call.1} parent=11 // pred_check
          %p215 = pneg %p87
        $region18: #{tpu_custom_call.1} parent=11 // pred_check_branch
          %217 = sbr.rel (%p215) target = $region20
        $region19: #{tpu_custom_call.1} parent=11 // pred_region
          _
        $region20: #{tpu_custom_call.1} parent=11 // pred_fallthru
          _
        // Predicated region
        $region21: #{tpu_custom_call.1} parent=11 // pred_check
          %p218 = pneg %p108
        $region22: #{tpu_custom_call.1} parent=11 // pred_check_branch
          %220 = sbr.rel (%p218) target = $region24
        $region23: #{tpu_custom_call.1} parent=11 // pred_region
          _
        $region24: #{tpu_custom_call.1} parent=11 // pred_fallthru
          _
        // Predicated region
        $region25: #{tpu_custom_call.1} parent=11 // pred_check
          %p221 = pneg %p129
        $region26: #{tpu_custom_call.1} parent=11 // pred_check_branch
          %223 = sbr.rel (%p221) target = $region28
        $region27: #{tpu_custom_call.1} parent=11 // pred_region
          _
        $region28: #{tpu_custom_call.1} parent=11 // pred_fallthru
          _
        // Predicated region
        $region29: #{tpu_custom_call.1} parent=11 // pred_check
          %p224 = pneg %p150
        $region30: #{tpu_custom_call.1} parent=11 // pred_check_branch
          %226 = sbr.rel (%p224) target = $region32
        $region31: #{tpu_custom_call.1} parent=11 // pred_region
          _
        $region32: #{tpu_custom_call.1} parent=11 // pred_fallthru
          _
        // Predicated region
        $region33: #{tpu_custom_call.1} parent=11 // pred_check
          %p227 = pneg %p171
        $region34: #{tpu_custom_call.1} parent=11 // pred_check_branch
          %229 = sbr.rel (%p227) target = $region36
        $region35: #{tpu_custom_call.1} parent=11 // pred_region
          _
        $region36: #{tpu_custom_call.1} parent=11 // pred_fallthru
          _
      $region12: #{tpu_custom_call.1} parent=5 // pred_fallthru
        _
      %p230 = scmp.lt.s32.totalorder %s19, 2
      // Predicated region
      $region37: #{tpu_custom_call.1} parent=5 // pred_check
        %p231 = pneg %p230
      $region38: #{tpu_custom_call.1} parent=5 // pred_check_branch
        %233 = sbr.rel (%p231) target = $region40
      $region39: #{tpu_custom_call.1} parent=5 // pred_region
        // Predicated region
        $region41: #{tpu_custom_call.1} parent=39 // pred_check
          %p234 = pneg %p39
        $region42: #{tpu_custom_call.1} parent=39 // pred_check_branch
          %236 = sbr.rel (%p234) target = $region44
        $region43: #{tpu_custom_call.1} parent=39 // pred_region
          %s237 = sand.u32 %s29, 1
          %s238 = scalar_lea.sflag [#allocation4], %s237
          %s239 = sand.u32 %s29, 1
          %s240 = smul.addr %s239, 32
          %s241 = scalar_lea.vmem [#allocation3], %s240
          %s242 = smul.u32 2, %s19
          %244 = vsyncadd %s238, 0
          %s245 = smul.addr %s242, 4
          %s246 = smul.addr %s245, 4
          %s247 = scalar_lea.hbm %s0, %s246
          %s248 = sshll.u32 %s247, 4
          %s249 = int_to_ptr.hbm [resolvable:$true] %s248
          %s250 = sshll.u32 %s241, 4
          %s251 = int_to_ptr.vmem [resolvable:$true] %s250
          %256 = dma.hbm_to_vmem [thread:$0]  %s249, 512, %s251, %s238, 256, 256, 16
        $region44: #{tpu_custom_call.1} parent=39 // pred_fallthru
          _
      $region40: #{tpu_custom_call.1} parent=5 // pred_fallthru
        _
      %p257 = scmp.le.s32.totalorder 1, %s19
      %p258 = scmp.lt.s32.totalorder %s19, 3
      %p259 = pnand %p257, %p258
      %p260 = pneg %p259
      // Predicated region
      $region45: #{tpu_custom_call.1} parent=5 // pred_check
        _
      $region46: #{tpu_custom_call.1} parent=5 // pred_check_branch
        %262 = sbr.rel (%p259) target = $region48
      $region47: #{tpu_custom_call.1} parent=5 // pred_region
        %s263 = ssub.s32 %s19, 1
        %s264 = sand.u32 %s32, 1
        %s265 = scalar_lea.sflag [#allocation4], %s264
        %s266 = sand.u32 %s32, 1
        %s267 = smul.addr %s266, 32
        %s268 = scalar_lea.vmem [#allocation3], %s267
        // Predicated region
        $region49: #{tpu_custom_call.1} parent=47 // pred_check
          %p269 = pneg %p45
        $region50: #{tpu_custom_call.1} parent=47 // pred_check_branch
          %271 = sbr.rel (%p269) target = $region52
        $region51: #{tpu_custom_call.1} parent=47 // pred_region
          %273 = dma.done %s265, 512
        $region52: #{tpu_custom_call.1} parent=47 // pred_fallthru
          _
        %s274 = sand.u32 %s32, 1
        %s275 = scalar_lea.sflag [#allocation4], %s274
        %s276 = sand.u32 %s32, 1
        %s277 = smul.addr %s276, 32
        %s278 = scalar_lea.vmem [#allocation3], %s277
        %p279 = pneg %p45
        %p280 = pneg %p42
        %p281 = pneg %p66
        %p282 = pneg %p63
        %p283 = pneg %p87
        %p284 = pneg %p84
        %p285 = pneg %p108
        %p286 = pneg %p105
        %p287 = pneg %p129
        %p288 = pneg %p126
        %p289 = pneg %p150
        %p290 = pneg %p147
        %p291 = pneg %p171
        %p292 = pneg %p168
        %p293 = pneg %p197
        %p294 = pneg %p194
        %s295 = sand.u32 %s184, 1
        %s296 = scalar_lea.sflag [#allocation5], %s295
        %s297 = sand.u32 %s184, 1
        %s298 = smul.addr %s297, 24
        %s299 = scalar_lea.vmem [#allocation6], %s298
        %s300 = smul.u32 2, %s24
        %s301 = smul.u32 2, %s24
        %v303 = vld [vmem:[%s2] sm:$0xff]
        %v304 = vld [vmem:[%s2 + $0x8] sm:$0xff]
        %v305 = vld [vmem:[%s3] sm:$0xff]
        %v306 = vld [vmem:[%s3 + $0x8] sm:$0xff]
        %v307 = vld [vmem:[%s5] sm:$0xff]
        %v308 = vld [vmem:[%s5 + $0x8] sm:$0xff]
        %v309 = vld [vmem:[%s6] sm:$0xff]
        %v310 = vld [vmem:[%s6 + $0x8] sm:$0xff]
        %v311 = vlaneseq
        %v312 = vand.u32 %v311, 127
        %v313 = vadd.s32 %v312, 128
        %v314 = vadd.s32 %v312, 256
        %vm315 = vcmp.lt.s32.totalorder %v312, 0
        %v316 = vsub.s32 0, %v312
        %v317 = vsel %vm315, %v316, %v312
        %v318 = vand.u32 %v317, 65535
        %v319 = vshrl.u32 %v317, 16
        %v321 = vmul.u32 %v318, 43691
        %v322 = vmul.u32 %v318, 43690
        %v323 = vmul.u32 %v319, 43691
        %v324 = vmul.u32 %v319, 43690
        %v325 = vshll.u32 %v322, 16
        %v326 = vshrl.u32 %v322, 16
        %v327 = vshll.u32 %v323, 16
        %v328 = vshrl.u32 %v323, 16
        %vm329 = vc.u32 %v321, %v325
        %v330 = vsel %vm329, 1, 0
        %v331 = vadd.s32 %v321, %v325
        %v332 = vadd.s32 %v324, %v330
        %vm333 = vc.u32 %v331, %v327
        %v334 = vsel %vm333, 1, 0
        %v335 = vadd.s32 %v331, %v327
        %v336 = vadd.s32 %v332, %v334
        %v337 = vadd.s32 %v336, %v326
        %v338 = vadd.s32 %v337, %v328
        %v339 = vshrl.u32 %v338, 8
        %v340 = vmul.u32 %v339, 384
        %v341 = vsub.s32 %v317, %v340
        %v342 = vsub.s32 0, %v341
        %v343 = vsel %vm315, %v342, %v341
        %vm344 = vcmp.lt.s32.totalorder %v313, 0
        %v345 = vsub.s32 0, %v313
        %v346 = vsel %vm344, %v345, %v313
        %v347 = vand.u32 %v346, 65535
        %v348 = vshrl.u32 %v346, 16
        %v350 = vmul.u32 %v347, 43691
        %v351 = vmul.u32 %v347, 43690
        %v352 = vmul.u32 %v348, 43691
        %v353 = vmul.u32 %v348, 43690
        %v354 = vshll.u32 %v351, 16
        %v355 = vshrl.u32 %v351, 16
        %v356 = vshll.u32 %v352, 16
        %v357 = vshrl.u32 %v352, 16
        %vm358 = vc.u32 %v350, %v354
        %v359 = vsel %vm358, 1, 0
        %v360 = vadd.s32 %v350, %v354
        %v361 = vadd.s32 %v353, %v359
        %vm362 = vc.u32 %v360, %v356
        %v363 = vsel %vm362, 1, 0
        %v364 = vadd.s32 %v360, %v356
        %v365 = vadd.s32 %v361, %v363
        %v366 = vadd.s32 %v365, %v355
        %v367 = vadd.s32 %v366, %v357
        %v368 = vshrl.u32 %v367, 8
        %v369 = vmul.u32 %v368, 384
        %v370 = vsub.s32 %v346, %v369
        %v371 = vsub.s32 0, %v370
        %v372 = vsel %vm344, %v371, %v370
        %vm373 = vcmp.lt.s32.totalorder %v314, 0
        %v374 = vsub.s32 0, %v314
        %v375 = vsel %vm373, %v374, %v314
        %v376 = vand.u32 %v375, 65535
        %v377 = vshrl.u32 %v375, 16
        %v379 = vmul.u32 %v376, 43691
        %v380 = vmul.u32 %v376, 43690
        %v381 = vmul.u32 %v377, 43691
        %v382 = vmul.u32 %v377, 43690
        %v383 = vshll.u32 %v380, 16
        %v384 = vshrl.u32 %v380, 16
        %v385 = vshll.u32 %v381, 16
        %v386 = vshrl.u32 %v381, 16
        %vm387 = vc.u32 %v379, %v383
        %v388 = vsel %vm387, 1, 0
        %v389 = vadd.s32 %v379, %v383
        %v390 = vadd.s32 %v382, %v388
        %vm391 = vc.u32 %v389, %v385
        %v392 = vsel %vm391, 1, 0
        %v393 = vadd.s32 %v389, %v385
        %v394 = vadd.s32 %v390, %v392
        %v395 = vadd.s32 %v394, %v384
        %v396 = vadd.s32 %v395, %v386
        %v397 = vshrl.u32 %v396, 8
        %v398 = vmul.u32 %v397, 384
        %v399 = vsub.s32 %v375, %v398
        %v400 = vsub.s32 0, %v399
        %v401 = vsel %vm373, %v400, %v399
        %vm402 = vcmp.ne.s32.totalorder %v343, 0
        %vm403 = vcmp.ne.s32.totalorder %v372, 0
        %vm404 = vcmp.ne.s32.totalorder %v401, 0
        %vm405 = vcmp.lt.s32.totalorder %v343, 0
        %vm406 = vcmp.lt.s32.totalorder %v372, 0
        %vm407 = vcmp.lt.s32.totalorder %v401, 0
        %vm408 = vmand %vm405, %vm402
        %vm409 = vmand %vm406, %vm403
        %vm410 = vmand %vm407, %vm404
        %v411 = vadd.s32 %v343, 384
        %v412 = vadd.s32 %v372, 384
        %v413 = vadd.s32 %v401, 384
        %v414 = vsel %vm408, %v411, %v343
        %v415 = vsel %vm409, %v412, %v372
        %v416 = vsel %vm410, %v413, %v401
        %vm417 = vcmp.lt.s32.totalorder %v414, 288
        %vm418 = vcmp.lt.s32.totalorder %v415, 288
        %vm419 = vcmp.lt.s32.totalorder %v416, 288
        %vm420 = vcmp.lt.s32.totalorder %v414, 0
        %v421 = vsub.s32 0, %v414
        %v422 = vsel %vm420, %v421, %v414
        %v423 = vand.u32 %v422, 65535
        %v424 = vshrl.u32 %v422, 16
        %v426 = vmul.u32 %v423, 14564
        %v427 = vmul.u32 %v423, 58254
        %v428 = vmul.u32 %v424, 14564
        %v429 = vmul.u32 %v424, 58254
        %v430 = vshll.u32 %v427, 16
        %v431 = vshrl.u32 %v427, 16
        %v432 = vshll.u32 %v428, 16
        %v433 = vshrl.u32 %v428, 16
        %vm434 = vc.u32 %v426, %v430
        %v435 = vsel %vm434, 1, 0
        %v436 = vadd.s32 %v426, %v430
        %v437 = vadd.s32 %v429, %v435
        %vm438 = vc.u32 %v436, %v432
        %v439 = vsel %vm438, 1, 0
        %v440 = vadd.s32 %v436, %v432
        %v441 = vadd.s32 %v437, %v439
        %v442 = vadd.s32 %v441, %v431
        %v443 = vadd.s32 %v442, %v433
        %v444 = vshrl.u32 %v443, 4
        %v445 = vmul.u32 %v444, 18
        %v446 = vsub.s32 %v422, %v445
        %v447 = vsub.s32 0, %v446
        %v448 = vsel %vm420, %v447, %v446
        %vm449 = vcmp.lt.s32.totalorder %v415, 0
        %v450 = vsub.s32 0, %v415
        %v451 = vsel %vm449, %v450, %v415
        %v452 = vand.u32 %v451, 65535
        %v453 = vshrl.u32 %v451, 16
        %v455 = vmul.u32 %v452, 14564
        %v456 = vmul.u32 %v452, 58254
        %v457 = vmul.u32 %v453, 14564
        %v458 = vmul.u32 %v453, 58254
        %v459 = vshll.u32 %v456, 16
        %v460 = vshrl.u32 %v456, 16
        %v461 = vshll.u32 %v457, 16
        %v462 = vshrl.u32 %v457, 16
        %vm463 = vc.u32 %v455, %v459
        %v464 = vsel %vm463, 1, 0
        %v465 = vadd.s32 %v455, %v459
        %v466 = vadd.s32 %v458, %v464
        %vm467 = vc.u32 %v465, %v461
        %v468 = vsel %vm467, 1, 0
        %v469 = vadd.s32 %v465, %v461
        %v470 = vadd.s32 %v466, %v468
        %v471 = vadd.s32 %v470, %v460
        %v472 = vadd.s32 %v471, %v462
        %v473 = vshrl.u32 %v472, 4
        %v474 = vmul.u32 %v473, 18
        %v475 = vsub.s32 %v451, %v474
        %v476 = vsub.s32 0, %v475
        %v477 = vsel %vm449, %v476, %v475
        %vm478 = vcmp.lt.s32.totalorder %v416, 0
        %v479 = vsub.s32 0, %v416
        %v480 = vsel %vm478, %v479, %v416
        %v481 = vand.u32 %v480, 65535
        %v482 = vshrl.u32 %v480, 16
        %v484 = vmul.u32 %v481, 14564
        %v485 = vmul.u32 %v481, 58254
        %v486 = vmul.u32 %v482, 14564
        %v487 = vmul.u32 %v482, 58254
        %v488 = vshll.u32 %v485, 16
        %v489 = vshrl.u32 %v485, 16
        %v490 = vshll.u32 %v486, 16
        %v491 = vshrl.u32 %v486, 16
        %vm492 = vc.u32 %v484, %v488
        %v493 = vsel %vm492, 1, 0
        %v494 = vadd.s32 %v484, %v488
        %v495 = vadd.s32 %v487, %v493
        %vm496 = vc.u32 %v494, %v490
        %v497 = vsel %vm496, 1, 0
        %v498 = vadd.s32 %v494, %v490
        %v499 = vadd.s32 %v495, %v497
        %v500 = vadd.s32 %v499, %v489
        %v501 = vadd.s32 %v500, %v491
        %v502 = vshrl.u32 %v501, 4
        %v503 = vmul.u32 %v502, 18
        %v504 = vsub.s32 %v480, %v503
        %v505 = vsub.s32 0, %v504
        %v506 = vsel %vm478, %v505, %v504
        %vm507 = vcmp.ne.s32.totalorder %v448, 0
        %vm508 = vcmp.ne.s32.totalorder %v477, 0
        %vm509 = vcmp.ne.s32.totalorder %v506, 0
        %vm510 = vcmp.lt.s32.totalorder %v448, 0
        %vm511 = vcmp.lt.s32.totalorder %v477, 0
        %vm512 = vcmp.lt.s32.totalorder %v506, 0
        %vm513 = vmand %vm510, %vm507
        %vm514 = vmand %vm511, %vm508
        %vm515 = vmand %vm512, %vm509
        %v516 = vadd.s32 %v448, 18
        %v517 = vadd.s32 %v477, 18
        %v518 = vadd.s32 %v506, 18
        %v519 = vsel %vm513, %v516, %v448
        %v520 = vsel %vm514, %v517, %v477
        %v521 = vsel %vm515, %v518, %v506
        %vm522 = vcmp.lt.s32.totalorder %v519, 16
        %vm523 = vcmp.lt.s32.totalorder %v520, 16
        %vm524 = vcmp.lt.s32.totalorder %v521, 16
        %vm525 = vmand %vm417, %vm522
        %vm526 = vmand %vm418, %vm523
        %vm527 = vmand %vm419, %vm524
        %v528 = vld [vmem:[%s268] sm:$0xff]
        %v529 = vld [vmem:[%s268 + $0x8] sm:$0xf]
        %v530 = vld [vmem:[%s268 + $0x10] sm:$0xff]
        %v531 = vld [vmem:[%s268 + $0x18] sm:$0xf]
        %v532 = vld [vmem:[%s268] sm:$0xff]
        %v533 = vld [vmem:[%s268 + $0x8] sm:$0xff]
        %v534 = vld [vmem:[%s268 + $0x10] sm:$0xff]
        %v535 = vld [vmem:[%s268 + $0x18] sm:$0xff]
        %v540 = vunpack.c.l.b16 %v528
        %v541 = vunpack.c.h.b16 %v528
        %v542 = vunpack.c.l.b16 %v529
        %v543 = vunpack.c.l.b16 %v530
        %v544 = vunpack.c.h.b16 %v530
        %v545 = vunpack.c.l.b16 %v531
        %v546 = vpack.c.b16 %v543, %v540
        %v547 = vpack.c.b16 %v544, %v541
        %v548 = vpack.c.b16 %v545, %v542
        %v556 = vunpack.c.l.b16 %v532
        %v557 = vunpack.c.h.b16 %v532
        %v558 = vunpack.c.l.b16 %v533
        %v559 = vunpack.c.h.b16 %v533
        %v560 = vunpack.c.l.b16 %v534
        %v561 = vunpack.c.h.b16 %v534
        %v562 = vunpack.c.l.b16 %v535
        %v563 = vunpack.c.h.b16 %v535
        %v564 = vpack.c.b16 %v560, %v556
        %v565 = vpack.c.b16 %v561, %v557
        %v566 = vpack.c.b16 %v562, %v558
        %v567 = vpack.c.b16 %v563, %v559
        %568 = vrot.lane.b32.xlu0 %v564, 127
        %v569 = vpop.permute.xlu0 %568
        %570 = vrot.lane.b32.xlu0 %v565, 127
        %v571 = vpop.permute.xlu0 %570
        %572 = vrot.lane.b32.xlu0 %v566, 127
        %v573 = vpop.permute.xlu0 %572
        %574 = vrot.lane.b32.xlu0 %v567, 127
        %v575 = vpop.permute.xlu0 %574
        %vm576 = vcmask 1039360
        %v577 = vsel %vm576, %v569, %v571
        %v578 = vsel %vm576, %v571, %v573
        %v579 = vsel %vm576, %v573, %v575
        %583 = vrot.lane.b32.xlu0 %v564, 126
        %v584 = vpop.permute.xlu0 %583
        %585 = vrot.lane.b32.xlu0 %v565, 126
        %v586 = vpop.permute.xlu0 %585
        %587 = vrot.lane.b32.xlu0 %v566, 126
        %v588 = vpop.permute.xlu0 %587
        %589 = vrot.lane.b32.xlu0 %v567, 126
        %v590 = vpop.permute.xlu0 %589
        %vm591 = vcmask 1031168
        %v592 = vsel %vm591, %v584, %v586
        %v593 = vsel %vm591, %v586, %v588
        %v594 = vsel %vm591, %v588, %v590
        %v598 = vld [vmem:[%s1] sm:$0xf]
        %v599 = vld [vmem:[%s1 + $0x4] sm:$0xf]
        %s600 = scalar_lea.vmem %s1, 8
        %v601 = vld [vmem:[%s600] sm:$0xf]
        %v602 = vld [vmem:[%s600 + $0x4] sm:$0xf]
        %v605 = vunpack.c.l.b16 %v601
        %v606 = vunpack.c.l.b16 %v602
        %v607 = vpack.c.b16 %v606, %v605
        %608 = vrot.lane.b32.xlu0 %v564, 110
        %v609 = vpop.permute.xlu0 %608
        %610 = vrot.lane.b32.xlu0 %v565, 110
        %v611 = vpop.permute.xlu0 %610
        %612 = vrot.lane.b32.xlu0 %v566, 110
        %v613 = vpop.permute.xlu0 %612
        %614 = vrot.lane.b32.xlu0 %v567, 110
        %v615 = vpop.permute.xlu0 %614
        %616 = vrot.lane.b32.xlu0 %v577, 110
        %v617 = vpop.permute.xlu0 %616
        %618 = vrot.lane.b32.xlu0 %v578, 110
        %v619 = vpop.permute.xlu0 %618
        %620 = vrot.lane.b32.xlu0 %v579, 110
        %v621 = vpop.permute.xlu0 %620
        %622 = vrot.lane.b32.xlu0 %v575, 110
        %v623 = vpop.permute.xlu0 %622
        %624 = vrot.lane.b32.xlu0 %v592, 110
        %v625 = vpop.permute.xlu0 %624
        %626 = vrot.lane.b32.xlu0 %v593, 110
        %v627 = vpop.permute.xlu0 %626
        %628 = vrot.lane.b32.xlu0 %v594, 110
        %v629 = vpop.permute.xlu0 %628
        %630 = vrot.lane.b32.xlu0 %v590, 110
        %v631 = vpop.permute.xlu0 %630
        %vm632 = vcmask 900096
        %v633 = vsel %vm632, %v609, %v611
        %v634 = vsel %vm632, %v611, %v613
        %v635 = vsel %vm632, %v613, %v615
        %v636 = vsel %vm632, %v617, %v619
        %v637 = vsel %vm632, %v619, %v621
        %v638 = vsel %vm632, %v621, %v623
        %v639 = vsel %vm632, %v625, %v627
        %v640 = vsel %vm632, %v627, %v629
        %v641 = vsel %vm632, %v629, %v631
        %vm651 = vcmask 392192
        %v653 = vsel %vm651, %v607, 0
        %655 = vmatpush.bf16.msra.mxu0 0
        %656 = vmatpush.bf16.msra.mxu0 0
        %657 = vmatpush.bf16.msra.mxu0 0
        %658 = vmatpush.bf16.msra.mxu0 0
        %659 = vmatpush.bf16.msra.mxu0 0
        %660 = vmatpush.bf16.msra.mxu0 %v639
        %661 = vmatpush.bf16.msra.mxu0 %v636
        %662 = vmatpush.bf16.msra.mxu0 %v633
        %663 = vmatmul.bf16.gmra.mxu0 %v653
        %v664 = vpop.f32.mrf.mxu0
        %v665 = vadd.f32 0.0, %v664
        %v666 = vpop.f32.mrf.mxu0
        %v667 = vadd.f32 0.0, %v666
        %668 = vdwg.mxu0
        %669 = vmatpush.bf16.msra.mxu0 0
        %670 = vmatpush.bf16.msra.mxu0 0
        %671 = vmatpush.bf16.msra.mxu0 0
        %672 = vmatpush.bf16.msra.mxu0 0
        %673 = vmatpush.bf16.msra.mxu0 0
        %674 = vmatpush.bf16.msra.mxu0 %v640
        %675 = vmatpush.bf16.msra.mxu0 %v637
        %676 = vmatpush.bf16.msra.mxu0 %v634
        %677 = vmatmul.bf16.gmra.mxu0 %v653
        %v678 = vpop.f32.mrf.mxu0
        %v679 = vadd.f32 0.0, %v678
        %v680 = vpop.f32.mrf.mxu0
        %v681 = vadd.f32 0.0, %v680
        %682 = vdwg.mxu0
        %683 = vmatpush.bf16.msra.mxu0 0
        %684 = vmatpush.bf16.msra.mxu0 0
        %685 = vmatpush.bf16.msra.mxu0 0
        %686 = vmatpush.bf16.msra.mxu0 0
        %687 = vmatpush.bf16.msra.mxu0 0
        %688 = vmatpush.bf16.msra.mxu0 %v641
        %689 = vmatpush.bf16.msra.mxu0 %v638
        %690 = vmatpush.bf16.msra.mxu0 %v635
        %691 = vmatmul.bf16.gmra.mxu0 %v653
        %v692 = vpop.f32.mrf.mxu0
        %v693 = vadd.f32 0.0, %v692
        %v694 = vpop.f32.mrf.mxu0
        %v695 = vadd.f32 0.0, %v694
        %696 = vdwg.mxu0
        %v699 = vunpack.c.l.b16 %v598
        %v700 = vunpack.c.l.b16 %v599
        %v701 = vpack.c.b16 %v700, %v699
        %v703 = vsel %vm651, %v701, 0
        %705 = vmatpush.bf16.msra.mxu0 0
        %706 = vmatpush.bf16.msra.mxu0 0
        %707 = vmatpush.bf16.msra.mxu0 0
        %708 = vmatpush.bf16.msra.mxu0 0
        %709 = vmatpush.bf16.msra.mxu0 0
        %710 = vmatpush.bf16.msra.mxu0 %v592
        %711 = vmatpush.bf16.msra.mxu0 %v577
        %712 = vmatpush.bf16.msra.mxu0 %v546
        %713 = vmatmul.bf16.gmra.mxu0 %v703
        %v714 = vpop.f32.mrf.mxu0
        %v715 = vadd.f32 %v665, %v714
        %v716 = vpop.f32.mrf.mxu0
        %v717 = vadd.f32 %v667, %v716
        %718 = vdwg.mxu0
        %719 = vmatpush.bf16.msra.mxu0 0
        %720 = vmatpush.bf16.msra.mxu0 0
        %721 = vmatpush.bf16.msra.mxu0 0
        %722 = vmatpush.bf16.msra.mxu0 0
        %723 = vmatpush.bf16.msra.mxu0 0
        %724 = vmatpush.bf16.msra.mxu0 %v593
        %725 = vmatpush.bf16.msra.mxu0 %v578
        %726 = vmatpush.bf16.msra.mxu0 %v547
        %727 = vmatmul.bf16.gmra.mxu0 %v703
        %v728 = vpop.f32.mrf.mxu0
        %v729 = vadd.f32 %v679, %v728
        %v730 = vpop.f32.mrf.mxu0
        %v731 = vadd.f32 %v681, %v730
        %732 = vdwg.mxu0
        %733 = vmatpush.bf16.msra.mxu0 0
        %734 = vmatpush.bf16.msra.mxu0 0
        %735 = vmatpush.bf16.msra.mxu0 0
        %736 = vmatpush.bf16.msra.mxu0 0
        %737 = vmatpush.bf16.msra.mxu0 0
        %738 = vmatpush.bf16.msra.mxu0 %v594
        %739 = vmatpush.bf16.msra.mxu0 %v579
        %740 = vmatpush.bf16.msra.mxu0 %v548
        %741 = vmatmul.bf16.gmra.mxu0 %v703
        %v742 = vpop.f32.mrf.mxu0
        %v743 = vadd.f32 %v693, %v742
        %v744 = vpop.f32.mrf.mxu0
        %v745 = vadd.f32 %v695, %v744
        %746 = vdwg.mxu0
        %s747 = scalar_lea.vmem %s1, 16
        %v748 = vld [vmem:[%s747] sm:$0xf]
        %v749 = vld [vmem:[%s747 + $0x4] sm:$0xf]
        %v752 = vunpack.c.l.b16 %v748
        %v753 = vunpack.c.l.b16 %v749
        %v754 = vpack.c.b16 %v753, %v752
        %755 = vrot.lane.b32.xlu0 %v564, 92
        %v756 = vpop.permute.xlu0 %755
        %757 = vrot.lane.b32.xlu0 %v565, 92
        %v758 = vpop.permute.xlu0 %757
        %759 = vrot.lane.b32.xlu0 %v566, 92
        %v760 = vpop.permute.xlu0 %759
        %761 = vrot.lane.b32.xlu0 %v567, 92
        %v762 = vpop.permute.xlu0 %761
        %763 = vrot.lane.b32.xlu0 %v577, 92
        %v764 = vpop.permute.xlu0 %763
        %765 = vrot.lane.b32.xlu0 %v578, 92
        %v766 = vpop.permute.xlu0 %765
        %767 = vrot.lane.b32.xlu0 %v579, 92
        %v768 = vpop.permute.xlu0 %767
        %769 = vrot.lane.b32.xlu0 %v575, 92
        %v770 = vpop.permute.xlu0 %769
        %771 = vrot.lane.b32.xlu0 %v592, 92
        %v772 = vpop.permute.xlu0 %771
        %773 = vrot.lane.b32.xlu0 %v593, 92
        %v774 = vpop.permute.xlu0 %773
        %775 = vrot.lane.b32.xlu0 %v594, 92
        %v776 = vpop.permute.xlu0 %775
        %777 = vrot.lane.b32.xlu0 %v590, 92
        %v778 = vpop.permute.xlu0 %777
        %vm779 = vcmask 752640
        %v780 = vsel %vm779, %v756, %v758
        %v781 = vsel %vm779, %v758, %v760
        %v782 = vsel %vm779, %v760, %v762
        %v783 = vsel %vm779, %v764, %v766
        %v784 = vsel %vm779, %v766, %v768
        %v785 = vsel %vm779, %v768, %v770
        %v786 = vsel %vm779, %v772, %v774
        %v787 = vsel %vm779, %v774, %v776
        %v788 = vsel %vm779, %v776, %v778
        %v799 = vsel %vm651, %v754, 0
        %801 = vmatpush.bf16.msra.mxu0 0
        %802 = vmatpush.bf16.msra.mxu0 0
        %803 = vmatpush.bf16.msra.mxu0 0
        %804 = vmatpush.bf16.msra.mxu0 0
        %805 = vmatpush.bf16.msra.mxu0 0
        %806 = vmatpush.bf16.msra.mxu0 %v786
        %807 = vmatpush.bf16.msra.mxu0 %v783
        %808 = vmatpush.bf16.msra.mxu0 %v780
        %809 = vmatmul.bf16.gmra.mxu0 %v799
        %v810 = vpop.f32.mrf.mxu0
        %v811 = vadd.f32 0.0, %v810
        %v812 = vpop.f32.mrf.mxu0
        %v813 = vadd.f32 0.0, %v812
        %814 = vdwg.mxu0
        %815 = vmatpush.bf16.msra.mxu0 0
        %816 = vmatpush.bf16.msra.mxu0 0
        %817 = vmatpush.bf16.msra.mxu0 0
        %818 = vmatpush.bf16.msra.mxu0 0
        %819 = vmatpush.bf16.msra.mxu0 0
        %820 = vmatpush.bf16.msra.mxu0 %v787
        %821 = vmatpush.bf16.msra.mxu0 %v784
        %822 = vmatpush.bf16.msra.mxu0 %v781
        %823 = vmatmul.bf16.gmra.mxu0 %v799
        %v824 = vpop.f32.mrf.mxu0
        %v825 = vadd.f32 0.0, %v824
        %v826 = vpop.f32.mrf.mxu0
        %v827 = vadd.f32 0.0, %v826
        %828 = vdwg.mxu0
        %829 = vmatpush.bf16.msra.mxu0 0
        %830 = vmatpush.bf16.msra.mxu0 0
        %831 = vmatpush.bf16.msra.mxu0 0
        %832 = vmatpush.bf16.msra.mxu0 0
        %833 = vmatpush.bf16.msra.mxu0 0
        %834 = vmatpush.bf16.msra.mxu0 %v788
        %835 = vmatpush.bf16.msra.mxu0 %v785
        %836 = vmatpush.bf16.msra.mxu0 %v782
        %837 = vmatmul.bf16.gmra.mxu0 %v799
        %v838 = vpop.f32.mrf.mxu0
        %v839 = vadd.f32 0.0, %v838
        %v840 = vpop.f32.mrf.mxu0
        %v841 = vadd.f32 0.0, %v840
        %842 = vdwg.mxu0
        %v843 = vadd.f32 %v715, %v811
        %v844 = vadd.f32 %v729, %v825
        %v845 = vadd.f32 %v743, %v839
        %v846 = vadd.f32 %v717, %v813
        %v847 = vadd.f32 %v731, %v827
        %v848 = vadd.f32 %v745, %v841
        %850 = vset.pattern.permute.xlu0 0
        %851 = vperm.xlu0 %850, %v303
        %v852 = vpop.permute.xlu0 %851
        %855 = vset.pattern.permute.xlu0 0
        %856 = vperm.xlu0 %855, %v304
        %v857 = vpop.permute.xlu0 %856
        %v859 = vmul.f32 %v843, %v852
        %v860 = vmul.f32 %v844, %v852
        %v861 = vmul.f32 %v845, %v852
        %v862 = vmul.f32 %v846, %v857
        %v863 = vmul.f32 %v847, %v857
        %v864 = vmul.f32 %v848, %v857
        %866 = vset.pattern.permute.xlu0 0
        %867 = vperm.xlu0 %866, %v305
        %v868 = vpop.permute.xlu0 %867
        %871 = vset.pattern.permute.xlu0 0
        %872 = vperm.xlu0 %871, %v306
        %v873 = vpop.permute.xlu0 %872
        %v875 = vadd.f32 %v859, %v868
        %v876 = vadd.f32 %v860, %v868
        %v877 = vadd.f32 %v861, %v868
        %v878 = vadd.f32 %v862, %v873
        %v879 = vadd.f32 %v863, %v873
        %v880 = vadd.f32 %v864, %v873
        %v881 = vmax.f32 %v875, 0.0
        %v882 = vmax.f32 %v876, 0.0
        %v883 = vmax.f32 %v877, 0.0
        %v884 = vmax.f32 %v878, 0.0
        %v885 = vmax.f32 %v879, 0.0
        %v886 = vmax.f32 %v880, 0.0
        %v887 = vsel %vm525, 1, 0
        %v888 = vsel %vm526, 1, 0
        %v889 = vsel %vm527, 1, 0
        %vm890 = vcmp.eq.s32.totalorder %v887, 1
        %vm891 = vcmp.eq.s32.totalorder %v888, 1
        %vm892 = vcmp.eq.s32.totalorder %v889, 1
        %v893 = vsel %vm890, %v881, 0.0
        %v894 = vsel %vm891, %v882, 0.0
        %v895 = vsel %vm892, %v883, 0.0
        %v896 = vsel %vm890, %v884, 0.0
        %v897 = vsel %vm891, %v885, 0.0
        %v898 = vsel %vm892, %v886, 0.0
        %vm899 = vcmask 150528
        %900 = vst.msk [vmem:[#allocation2] sm:$0xf] %vm899, 0
        %901 = vst.msk [vmem:[#allocation2 + $0x10] sm:$0xf] %vm899, 0
        %vm902 = vcmask 1043608
        %903 = vst.msk [vmem:[#allocation2 + $0xc] sm:$0xf] %vm902, 0
        %904 = vst.msk [vmem:[#allocation2 + $0x1c] sm:$0xf] %vm902, 0
        %v905 = vpack.c.bf16 %v894, %v893
        %v906 = vpack.c.bf16 %v895, %v895
        %v907 = vpack.c.bf16 %v897, %v896
        %v908 = vpack.c.bf16 %v898, %v898
        %913 = vrot.lane.b32.xlu0 %v905, 19
        %v914 = vpop.permute.xlu0 %913
        %915 = vrot.lane.b32.xlu0 %v906, 19
        %v916 = vpop.permute.xlu0 %915
        %917 = vrot.lane.b32.xlu0 %v907, 19
        %v918 = vpop.permute.xlu0 %917
        %919 = vrot.lane.b32.xlu0 %v908, 19
        %v920 = vpop.permute.xlu0 %919
        %v921 = vrot.slane %v914, 4
        %v922 = vrot.slane %v916, 4
        %v923 = vrot.slane %v918, 4
        %v924 = vrot.slane %v920, 4
        %vm925 = vcmask 154624
        %v926 = vsel %vm925, %v921, %v914
        %vm927 = vcmask 1043456
        %v928 = vsel %vm927, %v921, %v922
        %v929 = vsel %vm925, %v928, %v916
        %v930 = vsel %vm925, %v923, %v918
        %v931 = vsel %vm927, %v923, %v924
        %v932 = vsel %vm925, %v931, %v920
        %vm937 = vcmask 1047556
        %vm938 = vmor %vm937, %vm902
        %939 = vst.msk [vmem:[#allocation2] sm:$0xff] %vm938, %v926
        %vm940 = vcmask 1043456
        %vm941 = vcmask 154628
        %vm942 = vmor %vm941, %vm940
        %943 = vst.msk [vmem:[#allocation2 + $0x8] sm:$0xff] %vm942, %v929
        %944 = vst.msk [vmem:[#allocation2 + $0x10] sm:$0xff] %vm938, %v930
        %945 = vst.msk [vmem:[#allocation2 + $0x18] sm:$0xff] %vm942, %v932
        %v946 = vld [vmem:[#allocation2] sm:$0xff]
        %v947 = vld [vmem:[#allocation2 + $0x8] sm:$0xf]
        %v948 = vld [vmem:[#allocation2 + $0x10] sm:$0xff]
        %v949 = vld [vmem:[#allocation2 + $0x18] sm:$0xf]
        %v950 = vld [vmem:[#allocation2] sm:$0xff]
        %v951 = vld [vmem:[#allocation2 + $0x8] sm:$0xff]
        %v952 = vld [vmem:[#allocation2 + $0x10] sm:$0xff]
        %v953 = vld [vmem:[#allocation2 + $0x18] sm:$0xff]
        %v958 = vunpack.c.l.b16 %v946
        %v959 = vunpack.c.h.b16 %v946
        %v960 = vunpack.c.l.b16 %v947
        %v961 = vunpack.c.l.b16 %v948
        %v962 = vunpack.c.h.b16 %v948
        %v963 = vunpack.c.l.b16 %v949
        %v964 = vpack.c.b16 %v961, %v958
        %v965 = vpack.c.b16 %v962, %v959
        %v966 = vpack.c.b16 %v963, %v960
        %v974 = vunpack.c.l.b16 %v950
        %v975 = vunpack.c.h.b16 %v950
        %v976 = vunpack.c.l.b16 %v951
        %v977 = vunpack.c.h.b16 %v951
        %v978 = vunpack.c.l.b16 %v952
        %v979 = vunpack.c.h.b16 %v952
        %v980 = vunpack.c.l.b16 %v953
        %v981 = vunpack.c.h.b16 %v953
        %v982 = vpack.c.b16 %v978, %v974
        %v983 = vpack.c.b16 %v979, %v975
        %v984 = vpack.c.b16 %v980, %v976
        %v985 = vpack.c.b16 %v981, %v977
        %986 = vrot.lane.b32.xlu0 %v982, 127
        %v987 = vpop.permute.xlu0 %986
        %988 = vrot.lane.b32.xlu0 %v983, 127
        %v989 = vpop.permute.xlu0 %988
        %990 = vrot.lane.b32.xlu0 %v984, 127
        %v991 = vpop.permute.xlu0 %990
        %992 = vrot.lane.b32.xlu0 %v985, 127
        %v993 = vpop.permute.xlu0 %992
        %v994 = vsel %vm576, %v987, %v989
        %v995 = vsel %vm576, %v989, %v991
        %v996 = vsel %vm576, %v991, %v993
        %1000 = vrot.lane.b32.xlu0 %v982, 126
        %v1001 = vpop.permute.xlu0 %1000
        %1002 = vrot.lane.b32.xlu0 %v983, 126
        %v1003 = vpop.permute.xlu0 %1002
        %1004 = vrot.lane.b32.xlu0 %v984, 126
        %v1005 = vpop.permute.xlu0 %1004
        %1006 = vrot.lane.b32.xlu0 %v985, 126
        %v1007 = vpop.permute.xlu0 %1006
        %v1008 = vsel %vm591, %v1001, %v1003
        %v1009 = vsel %vm591, %v1003, %v1005
        %v1010 = vsel %vm591, %v1005, %v1007
        %v1014 = vld [vmem:[%s4] sm:$0xf]
        %v1015 = vld [vmem:[%s4 + $0x4] sm:$0xf]
        %s1016 = scalar_lea.vmem %s4, 8
        %v1017 = vld [vmem:[%s1016] sm:$0xf]
        %v1018 = vld [vmem:[%s1016 + $0x4] sm:$0xf]
        %v1021 = vunpack.c.l.b16 %v1017
        %v1022 = vunpack.c.l.b16 %v1018
        %v1023 = vpack.c.b16 %v1022, %v1021
        %1024 = vrot.lane.b32.xlu0 %v982, 110
        %v1025 = vpop.permute.xlu0 %1024
        %1026 = vrot.lane.b32.xlu0 %v983, 110
        %v1027 = vpop.permute.xlu0 %1026
        %1028 = vrot.lane.b32.xlu0 %v984, 110
        %v1029 = vpop.permute.xlu0 %1028
        %1030 = vrot.lane.b32.xlu0 %v985, 110
        %v1031 = vpop.permute.xlu0 %1030
        %1032 = vrot.lane.b32.xlu0 %v994, 110
        %v1033 = vpop.permute.xlu0 %1032
        %1034 = vrot.lane.b32.xlu0 %v995, 110
        %v1035 = vpop.permute.xlu0 %1034
        %1036 = vrot.lane.b32.xlu0 %v996, 110
        %v1037 = vpop.permute.xlu0 %1036
        %1038 = vrot.lane.b32.xlu0 %v993, 110
        %v1039 = vpop.permute.xlu0 %1038
        %1040 = vrot.lane.b32.xlu0 %v1008, 110
        %v1041 = vpop.permute.xlu0 %1040
        %1042 = vrot.lane.b32.xlu0 %v1009, 110
        %v1043 = vpop.permute.xlu0 %1042
        %1044 = vrot.lane.b32.xlu0 %v1010, 110
        %v1045 = vpop.permute.xlu0 %1044
        %1046 = vrot.lane.b32.xlu0 %v1007, 110
        %v1047 = vpop.permute.xlu0 %1046
        %v1048 = vsel %vm632, %v1025, %v1027
        %v1049 = vsel %vm632, %v1027, %v1029
        %v1050 = vsel %vm632, %v1029, %v1031
        %v1051 = vsel %vm632, %v1033, %v1035
        %v1052 = vsel %vm632, %v1035, %v1037
        %v1053 = vsel %vm632, %v1037, %v1039
        %v1054 = vsel %vm632, %v1041, %v1043
        %v1055 = vsel %vm632, %v1043, %v1045
        %v1056 = vsel %vm632, %v1045, %v1047
        %v1067 = vsel %vm651, %v1023, 0
        %1069 = vmatpush.bf16.msra.mxu0 0
        %1070 = vmatpush.bf16.msra.mxu0 0
        %1071 = vmatpush.bf16.msra.mxu0 0
        %1072 = vmatpush.bf16.msra.mxu0 0
        %1073 = vmatpush.bf16.msra.mxu0 0
        %1074 = vmatpush.bf16.msra.mxu0 %v1054
        %1075 = vmatpush.bf16.msra.mxu0 %v1051
        %1076 = vmatpush.bf16.msra.mxu0 %v1048
        %1077 = vmatmul.bf16.gmra.mxu0 %v1067
        %v1078 = vpop.f32.mrf.mxu0
        %v1079 = vadd.f32 0.0, %v1078
        %v1080 = vpop.f32.mrf.mxu0
        %v1081 = vadd.f32 0.0, %v1080
        %1082 = vdwg.mxu0
        %1083 = vmatpush.bf16.msra.mxu0 0
        %1084 = vmatpush.bf16.msra.mxu0 0
        %1085 = vmatpush.bf16.msra.mxu0 0
        %1086 = vmatpush.bf16.msra.mxu0 0
        %1087 = vmatpush.bf16.msra.mxu0 0
        %1088 = vmatpush.bf16.msra.mxu0 %v1055
        %1089 = vmatpush.bf16.msra.mxu0 %v1052
        %1090 = vmatpush.bf16.msra.mxu0 %v1049
        %1091 = vmatmul.bf16.gmra.mxu0 %v1067
        %v1092 = vpop.f32.mrf.mxu0
        %v1093 = vadd.f32 0.0, %v1092
        %v1094 = vpop.f32.mrf.mxu0
        %v1095 = vadd.f32 0.0, %v1094
        %1096 = vdwg.mxu0
        %1097 = vmatpush.bf16.msra.mxu0 0
        %1098 = vmatpush.bf16.msra.mxu0 0
        %1099 = vmatpush.bf16.msra.mxu0 0
        %1100 = vmatpush.bf16.msra.mxu0 0
        %1101 = vmatpush.bf16.msra.mxu0 0
        %1102 = vmatpush.bf16.msra.mxu0 %v1056
        %1103 = vmatpush.bf16.msra.mxu0 %v1053
        %1104 = vmatpush.bf16.msra.mxu0 %v1050
        %1105 = vmatmul.bf16.gmra.mxu0 %v1067
        %v1106 = vpop.f32.mrf.mxu0
        %v1107 = vadd.f32 0.0, %v1106
        %v1108 = vpop.f32.mrf.mxu0
        %v1109 = vadd.f32 0.0, %v1108
        %1110 = vdwg.mxu0
        %v1113 = vunpack.c.l.b16 %v1014
        %v1114 = vunpack.c.l.b16 %v1015
        %v1115 = vpack.c.b16 %v1114, %v1113
        %v1117 = vsel %vm651, %v1115, 0
        %1119 = vmatpush.bf16.msra.mxu0 0
        %1120 = vmatpush.bf16.msra.mxu0 0
        %1121 = vmatpush.bf16.msra.mxu0 0
        %1122 = vmatpush.bf16.msra.mxu0 0
        %1123 = vmatpush.bf16.msra.mxu0 0
        %1124 = vmatpush.bf16.msra.mxu0 %v1008
        %1125 = vmatpush.bf16.msra.mxu0 %v994
        %1126 = vmatpush.bf16.msra.mxu0 %v964
        %1127 = vmatmul.bf16.gmra.mxu0 %v1117
        %v1128 = vpop.f32.mrf.mxu0
        %v1129 = vadd.f32 %v1079, %v1128
        %v1130 = vpop.f32.mrf.mxu0
        %v1131 = vadd.f32 %v1081, %v1130
        %1132 = vdwg.mxu0
        %1133 = vmatpush.bf16.msra.mxu0 0
        %1134 = vmatpush.bf16.msra.mxu0 0
        %1135 = vmatpush.bf16.msra.mxu0 0
        %1136 = vmatpush.bf16.msra.mxu0 0
        %1137 = vmatpush.bf16.msra.mxu0 0
        %1138 = vmatpush.bf16.msra.mxu0 %v1009
        %1139 = vmatpush.bf16.msra.mxu0 %v995
        %1140 = vmatpush.bf16.msra.mxu0 %v965
        %1141 = vmatmul.bf16.gmra.mxu0 %v1117
        %v1142 = vpop.f32.mrf.mxu0
        %v1143 = vadd.f32 %v1093, %v1142
        %v1144 = vpop.f32.mrf.mxu0
        %v1145 = vadd.f32 %v1095, %v1144
        %1146 = vdwg.mxu0
        %1147 = vmatpush.bf16.msra.mxu0 0
        %1148 = vmatpush.bf16.msra.mxu0 0
        %1149 = vmatpush.bf16.msra.mxu0 0
        %1150 = vmatpush.bf16.msra.mxu0 0
        %1151 = vmatpush.bf16.msra.mxu0 0
        %1152 = vmatpush.bf16.msra.mxu0 %v1010
        %1153 = vmatpush.bf16.msra.mxu0 %v996
        %1154 = vmatpush.bf16.msra.mxu0 %v966
        %1155 = vmatmul.bf16.gmra.mxu0 %v1117
        %v1156 = vpop.f32.mrf.mxu0
        %v1157 = vadd.f32 %v1107, %v1156
        %v1158 = vpop.f32.mrf.mxu0
        %v1159 = vadd.f32 %v1109, %v1158
        %1160 = vdwg.mxu0
        %s1161 = scalar_lea.vmem %s4, 16
        %v1162 = vld [vmem:[%s1161] sm:$0xf]
        %v1163 = vld [vmem:[%s1161 + $0x4] sm:$0xf]
        %v1166 = vunpack.c.l.b16 %v1162
        %v1167 = vunpack.c.l.b16 %v1163
        %v1168 = vpack.c.b16 %v1167, %v1166
        %1169 = vrot.lane.b32.xlu0 %v982, 92
        %v1170 = vpop.permute.xlu0 %1169
        %1171 = vrot.lane.b32.xlu0 %v983, 92
        %v1172 = vpop.permute.xlu0 %1171
        %1173 = vrot.lane.b32.xlu0 %v984, 92
        %v1174 = vpop.permute.xlu0 %1173
        %1175 = vrot.lane.b32.xlu0 %v985, 92
        %v1176 = vpop.permute.xlu0 %1175
        %1177 = vrot.lane.b32.xlu0 %v994, 92
        %v1178 = vpop.permute.xlu0 %1177
        %1179 = vrot.lane.b32.xlu0 %v995, 92
        %v1180 = vpop.permute.xlu0 %1179
        %1181 = vrot.lane.b32.xlu0 %v996, 92
        %v1182 = vpop.permute.xlu0 %1181
        %1183 = vrot.lane.b32.xlu0 %v993, 92
        %v1184 = vpop.permute.xlu0 %1183
        %1185 = vrot.lane.b32.xlu0 %v1008, 92
        %v1186 = vpop.permute.xlu0 %1185
        %1187 = vrot.lane.b32.xlu0 %v1009, 92
        %v1188 = vpop.permute.xlu0 %1187
        %1189 = vrot.lane.b32.xlu0 %v1010, 92
        %v1190 = vpop.permute.xlu0 %1189
        %1191 = vrot.lane.b32.xlu0 %v1007, 92
        %v1192 = vpop.permute.xlu0 %1191
        %v1193 = vsel %vm779, %v1170, %v1172
        %v1194 = vsel %vm779, %v1172, %v1174
        %v1195 = vsel %vm779, %v1174, %v1176
        %v1196 = vsel %vm779, %v1178, %v1180
        %v1197 = vsel %vm779, %v1180, %v1182
        %v1198 = vsel %vm779, %v1182, %v1184
        %v1199 = vsel %vm779, %v1186, %v1188
        %v1200 = vsel %vm779, %v1188, %v1190
        %v1201 = vsel %vm779, %v1190, %v1192
        %v1212 = vsel %vm651, %v1168, 0
        %1214 = vmatpush.bf16.msra.mxu0 0
        %1215 = vmatpush.bf16.msra.mxu0 0
        %1216 = vmatpush.bf16.msra.mxu0 0
        %1217 = vmatpush.bf16.msra.mxu0 0
        %1218 = vmatpush.bf16.msra.mxu0 0
        %1219 = vmatpush.bf16.msra.mxu0 %v1199
        %1220 = vmatpush.bf16.msra.mxu0 %v1196
        %1221 = vmatpush.bf16.msra.mxu0 %v1193
        %1222 = vmatmul.bf16.gmra.mxu0 %v1212
        %v1223 = vpop.f32.mrf.mxu0
        %v1224 = vadd.f32 0.0, %v1223
        %v1225 = vpop.f32.mrf.mxu0
        %v1226 = vadd.f32 0.0, %v1225
        %1227 = vdwg.mxu0
        %1228 = vmatpush.bf16.msra.mxu0 0
        %1229 = vmatpush.bf16.msra.mxu0 0
        %1230 = vmatpush.bf16.msra.mxu0 0
        %1231 = vmatpush.bf16.msra.mxu0 0
        %1232 = vmatpush.bf16.msra.mxu0 0
        %1233 = vmatpush.bf16.msra.mxu0 %v1200
        %1234 = vmatpush.bf16.msra.mxu0 %v1197
        %1235 = vmatpush.bf16.msra.mxu0 %v1194
        %1236 = vmatmul.bf16.gmra.mxu0 %v1212
        %v1237 = vpop.f32.mrf.mxu0
        %v1238 = vadd.f32 0.0, %v1237
        %v1239 = vpop.f32.mrf.mxu0
        %v1240 = vadd.f32 0.0, %v1239
        %1241 = vdwg.mxu0
        %1242 = vmatpush.bf16.msra.mxu0 0
        %1243 = vmatpush.bf16.msra.mxu0 0
        %1244 = vmatpush.bf16.msra.mxu0 0
        %1245 = vmatpush.bf16.msra.mxu0 0
        %1246 = vmatpush.bf16.msra.mxu0 0
        %1247 = vmatpush.bf16.msra.mxu0 %v1201
        %1248 = vmatpush.bf16.msra.mxu0 %v1198
        %1249 = vmatpush.bf16.msra.mxu0 %v1195
        %1250 = vmatmul.bf16.gmra.mxu0 %v1212
        %v1251 = vpop.f32.mrf.mxu0
        %v1252 = vadd.f32 0.0, %v1251
        %v1253 = vpop.f32.mrf.mxu0
        %v1254 = vadd.f32 0.0, %v1253
        %1255 = vdwg.mxu0
        %v1256 = vadd.f32 %v1129, %v1224
        %v1257 = vadd.f32 %v1143, %v1238
        %v1258 = vadd.f32 %v1157, %v1252
        %v1259 = vadd.f32 %v1131, %v1226
        %v1260 = vadd.f32 %v1145, %v1240
        %v1261 = vadd.f32 %v1159, %v1254
        %v1262 = vld [vmem:[%s268] sm:$0xff]
        %v1263 = vld [vmem:[%s268 + $0x8] sm:$0xff]
        %v1264 = vld [vmem:[%s268 + $0x10] sm:$0xff]
        %v1265 = vld [vmem:[%s268 + $0x18] sm:$0xff]
        %v1266 = vunpack.c.l.bf16 %v1262
        %v1267 = vunpack.c.h.bf16 %v1262
        %v1268 = vunpack.c.l.bf16 %v1263
        %v1269 = vunpack.c.h.bf16 %v1263
        %v1270 = vunpack.c.l.bf16 %v1264
        %v1271 = vunpack.c.h.bf16 %v1264
        %v1272 = vunpack.c.l.bf16 %v1265
        %v1273 = vunpack.c.h.bf16 %v1265
        %1275 = vset.pattern.permute.xlu0 0
        %1276 = vperm.xlu0 %1275, %v307
        %v1277 = vpop.permute.xlu0 %1276
        %1280 = vset.pattern.permute.xlu0 0
        %1281 = vperm.xlu0 %1280, %v308
        %v1282 = vpop.permute.xlu0 %1281
        %v1284 = vmul.f32 %v1256, %v1277
        %v1285 = vmul.f32 %v1257, %v1277
        %v1286 = vmul.f32 %v1258, %v1277
        %v1287 = vmul.f32 %v1259, %v1282
        %v1288 = vmul.f32 %v1260, %v1282
        %v1289 = vmul.f32 %v1261, %v1282
        %1291 = vset.pattern.permute.xlu0 0
        %1292 = vperm.xlu0 %1291, %v309
        %v1293 = vpop.permute.xlu0 %1292
        %1296 = vset.pattern.permute.xlu0 0
        %1297 = vperm.xlu0 %1296, %v310
        %v1298 = vpop.permute.xlu0 %1297
        %v1300 = vadd.f32 %v1284, %v1293
        %v1301 = vadd.f32 %v1285, %v1293
        %v1302 = vadd.f32 %v1286, %v1293
        %v1303 = vadd.f32 %v1287, %v1298
        %v1304 = vadd.f32 %v1288, %v1298
        %v1305 = vadd.f32 %v1289, %v1298
        %1314 = vrot.lane.b32.xlu0 %v1266, 109
        %v1315 = vpop.permute.xlu0 %1314
        %1316 = vrot.lane.b32.xlu0 %v1267, 109
        %v1317 = vpop.permute.xlu0 %1316
        %1318 = vrot.lane.b32.xlu0 %v1268, 109
        %v1319 = vpop.permute.xlu0 %1318
        %1320 = vrot.lane.b32.xlu0 %v1269, 109
        %v1321 = vpop.permute.xlu0 %1320
        %1322 = vrot.lane.b32.xlu0 %v1270, 109
        %v1323 = vpop.permute.xlu0 %1322
        %1324 = vrot.lane.b32.xlu0 %v1271, 109
        %v1325 = vpop.permute.xlu0 %1324
        %1326 = vrot.lane.b32.xlu0 %v1272, 109
        %v1327 = vpop.permute.xlu0 %1326
        %1328 = vrot.lane.b32.xlu0 %v1273, 109
        %v1329 = vpop.permute.xlu0 %1328
        %vm1330 = vcmask 891904
        %v1331 = vsel %vm1330, %v1315, %v1317
        %v1332 = vsel %vm1330, %v1317, %v1319
        %v1333 = vsel %vm1330, %v1319, %v1321
        %v1334 = vsel %vm1330, %v1323, %v1325
        %v1335 = vsel %vm1330, %v1325, %v1327
        %v1336 = vsel %vm1330, %v1327, %v1329
        %v1343 = vadd.f32 %v1300, %v1331
        %v1344 = vadd.f32 %v1301, %v1332
        %v1345 = vadd.f32 %v1302, %v1333
        %v1346 = vadd.f32 %v1303, %v1334
        %v1347 = vadd.f32 %v1304, %v1335
        %v1348 = vadd.f32 %v1305, %v1336
        %v1349 = vmax.f32 %v1343, 0.0
        %v1350 = vmax.f32 %v1344, 0.0
        %v1351 = vmax.f32 %v1345, 0.0
        %v1352 = vmax.f32 %v1346, 0.0
        %v1353 = vmax.f32 %v1347, 0.0
        %v1354 = vmax.f32 %v1348, 0.0
        %v1355 = vpack.c.bf16 %v1350, %v1349
        %v1356 = vpack.c.bf16 %v1351, %v1351
        %v1357 = vpack.c.bf16 %v1353, %v1352
        %v1358 = vpack.c.bf16 %v1354, %v1354
        %1359 = vst [vmem:[%s299] sm:$0xff] %v1355
        %1360 = vst [vmem:[%s299 + $0x8] sm:$0xf] %v1356
        %1361 = vst [vmem:[%s299 + $0xc] sm:$0xff] %v1357
        %1362 = vst [vmem:[%s299 + $0x14] sm:$0xf] %v1358
        %s1363 = sand.u32 %s184, 1
        %s1364 = scalar_lea.sflag [#allocation5], %s1363
        %s1365 = sand.u32 %s184, 1
        %s1366 = smul.addr %s1365, 24
        %s1367 = scalar_lea.vmem [#allocation6], %s1366
        // Predicated region
        $region53: #{tpu_custom_call.1} parent=47 // pred_check
          %p1368 = pneg %p194
        $region54: #{tpu_custom_call.1} parent=47 // pred_check_branch
          %1370 = sbr.rel (%p1368) target = $region56
        $region55: #{tpu_custom_call.1} parent=47 // pred_region
          %s1371 = smul.u32 2, %s24
          %1373 = vsyncadd %s1364, 0
          %s1374 = smul.addr %s1371, 3
          %s1375 = smul.addr %s1374, 4
          %s1376 = scalar_lea.hbm %s7, %s1375
          %s1377 = sshll.u32 %s1367, 4
          %s1378 = int_to_ptr.vmem [resolvable:$true] %s1377
          %s1379 = sshll.u32 %s1376, 4
          %s1380 = int_to_ptr.hbm [resolvable:$true] %s1379
          %1385 = dma.vmem_to_hbm [thread:$0]  %s1378, 384, %s1380, %s1364, 192, 192, 12
        $region56: #{tpu_custom_call.1} parent=47 // pred_fallthru
          _
      $region48: #{tpu_custom_call.1} parent=5 // pred_fallthru
        _
      %p1386 = scmp.le.s32.totalorder 2, %s19
      // Predicated region
      $region57: #{tpu_custom_call.1} parent=5 // pred_check
        %p1387 = pneg %p1386
      $region58: #{tpu_custom_call.1} parent=5 // pred_check_branch
        %1389 = sbr.rel (%p1387) target = $region60
      $region59: #{tpu_custom_call.1} parent=5 // pred_region
        %s1390 = ssub.s32 %s19, 2
        // Predicated region
        $region61: #{tpu_custom_call.1} parent=59 // pred_check
          %p1391 = pneg %p200
        $region62: #{tpu_custom_call.1} parent=59 // pred_check_branch
          %1393 = sbr.rel (%p1391) target = $region64
        $region63: #{tpu_custom_call.1} parent=59 // pred_region
          %s1394 = sand.u32 %s185, 1
          %s1395 = scalar_lea.sflag [#allocation5], %s1394
          %s1396 = sand.u32 %s185, 1
          %s1397 = smul.addr %s1396, 24
          %s1398 = scalar_lea.vmem [#allocation6], %s1397
          %1400 = dma.done %s1395, 384
        $region64: #{tpu_custom_call.1} parent=59 // pred_fallthru
          _
      $region60: #{tpu_custom_call.1} parent=5 // pred_fallthru
        _
    $region6: #{tpu_custom_call.1} parent=1 // loop_footer
      %s23 = sadd.s32 1, %s19
    $region7: #{tpu_custom_call.1} parent=1 // loop_footer_branch
      %18 = sbr.rel target = $region3
    $region8: #{tpu_custom_call.1} parent=1 // loop_exit
      _
    %1401 = vsyncpa [#allocation4], 1
    %s1402 = scalar_lea.sflag [#allocation4], 1
    %1403 = vsyncpa %s1402, 1
    %1404 = vsyncpa [#allocation5], 1
    %s1405 = scalar_lea.sflag [#allocation5], 1
    %1406 = vsyncpa %s1405, 1

</llo_original>
